<compile_context>
chip_gen: v7x
topology: tpu7x:2x2x1
jax: 0.10.0
libtpu: 0.0.40
codegen_flags: <defaults>
</compile_context>

<pallas_src>
import math
import functools

import jax
import jax.numpy as jnp
from jax.experimental import pallas as pl
from jax.experimental.pallas import tpu as pltpu  # noqa: F401  (kept for TPU-specific tuning hooks)

# ----------------------- model dims (synthetic transformer) -----------------
B = 2          # batch
S = 8          # sequence length
H = 32         # hidden size
NUM_HEADS = 2
HEAD_DIM = H // NUM_HEADS
FFN = 64       # intermediate size
VOCAB = 100
LN_EPS = 1e-12
PACK_W = 3 * H  # width of the packed small-params array (96)


def _gelu_tanh(x):
    # tanh-approx GELU (EUP-friendly); HF "gelu_new"
    c = math.sqrt(2.0 / math.pi)
    return 0.5 * x * (1.0 + jnp.tanh(c * (x + 0.044715 * x * x * x)))


# ----------------------------- Pallas kernel --------------------------------
def encoder_kernel(x_ref, negb_ref, wqkv_ref, wo_ref, w1_ref, w2_ref,
                   small_ref, out_ref):
    # x_ref    : (B*S, H)  f32   batch folded into sublanes
    # negb_ref : (B, S)    f32   additive attention bias (0 valid / -1e9 pad)
    # wqkv_ref : (H, 3H)   f32   fused Q|K|V projection
    # wo_ref   : (H, H), w1_ref : (H, FFN), w2_ref : (FFN, H)
    # small_ref: (8, 3H)   f32   packed biases + LayerNorm params
    x = x_ref[...]                               # (B*S, H)
    small = small_ref[...]                       # (8, 3H)

    bqkv = small[0:1, :]                         # (1, 3H)
    bo   = small[1:2, :H]
    b1   = small[2:3, :FFN]
    b2   = small[3:4, :H]
    ln1g = small[4:5, :H]
    ln1b = small[5:6, :H]
    ln2g = small[6:7, :H]
    ln2b = small[7:8, :H]

    # ---- fused QKV projection: one MXU push over all B*S rows ----
    qkv = jnp.dot(x, wqkv_ref[...], preferred_element_type=jnp.float32) + bqkv
    q = qkv[:, 0 * H:1 * H]
    k = qkv[:, 1 * H:2 * H]
    v = qkv[:, 2 * H:3 * H]

    neg_bias = negb_ref[...]                     # (B, S)
    inv_sqrt_d = 1.0 / math.sqrt(HEAD_DIM)

    # ---- attention scores / softmax / context: tiny static per-batch loop ----
    ctx_rows = []
    for b in range(B):                           # static, unrolled (B=2)
        r0, r1 = b * S, (b + 1) * S
        qb, kb, vb = q[r0:r1, :], k[r0:r1, :], v[r0:r1, :]      # (S, H)
        nb = neg_bias[b:b + 1, :]                               # (1, S)
        heads = []
        for h in range(NUM_HEADS):               # static, unrolled (2 heads)
            lo, hi = h * HEAD_DIM, (h + 1) * HEAD_DIM
            sc = jnp.dot(qb[:, lo:hi], kb[:, lo:hi].T,
                         preferred_element_type=jnp.float32) * inv_sqrt_d
            sc = sc + nb                         # broadcast over query rows
            m = jnp.max(sc, axis=-1, keepdims=True)
            p = jnp.exp(sc - m)
            denom = jnp.sum(p, axis=-1, keepdims=True)
            p = p * pl.reciprocal(denom, approx=True)           # EUP vrcp
            heads.append(jnp.dot(p, vb[:, lo:hi],
                                 preferred_element_type=jnp.float32))
        ctx_rows.append(jnp.concatenate(heads, axis=-1))        # (S, H)
    ctx = jnp.concatenate(ctx_rows, axis=0)                     # (B*S, H)

    # ---- single output projection over all rows ----
    attn_out = jnp.dot(ctx, wo_ref[...], preferred_element_type=jnp.float32) + bo

    # ---- residual + LayerNorm 1 ----
    h1 = x + attn_out
    mu = jnp.mean(h1, axis=-1, keepdims=True)
    var = jnp.mean((h1 - mu) * (h1 - mu), axis=-1, keepdims=True)
    h1n = (h1 - mu) * jax.lax.rsqrt(var + LN_EPS) * ln1g + ln1b

    # ---- feed-forward ----
    f = jnp.dot(h1n, w1_ref[...], preferred_element_type=jnp.float32) + b1
    f = _gelu_tanh(f)
    f = jnp.dot(f, w2_ref[...], preferred_element_type=jnp.float32) + b2

    # ---- residual + LayerNorm 2 ----
    h2 = h1n + f
    mu2 = jnp.mean(h2, axis=-1, keepdims=True)
    var2 = jnp.mean((h2 - mu2) * (h2 - mu2), axis=-1, keepdims=True)
    out = (h2 - mu2) * jax.lax.rsqrt(var2 + LN_EPS) * ln2g + ln2b

    out_ref[...] = out.astype(out_ref.dtype)


# ------------------------------- wrapper -------------------------------------
def _pack_small(params):
    """Pack the 10 tiny (1, H)/(1, FFN)/(1, 3H) params into one (8, 3H) array."""
    def pad(v):
        v = v.reshape(1, -1)
        return jnp.pad(v, ((0, 0), (0, PACK_W - v.shape[1])))
    rows = [
        jnp.concatenate([params["bq"], params["bk"], params["bv"]], axis=-1),  # (1, 3H)
        pad(params["bo"]),
        pad(params["b1"]),
        pad(params["b2"]),
        pad(params["ln1g"]),
        pad(params["ln1b"]),
        pad(params["ln2g"]),
        pad(params["ln2b"]),
    ]
    return jnp.concatenate(rows, axis=0)                                       # (8, 3H)


@functools.partial(jax.jit, static_argnames=())
def transformers_wrapper_forward(input_ids, attention_mask, params):
    """Returns (last_hidden_state (B,S,H) f32, lengths (B,) int32)."""
    # glue: embedding lookup + position embeddings (gather stays in plain JAX)
    x = params["tok_emb"][input_ids] + params["pos_emb"][None, :, :]   # (B, S, H)
    x2d = x.reshape(B * S, H)                                          # batch on sublanes

    mask = attention_mask.astype(jnp.int32)                            # (B, S)
    # lengths = attention_mask.sum(dim=-1)  (torch would give int64; TPU -> int32)
    lengths = jnp.sum(mask, axis=-1)                                   # (B,) int32
    neg_bias = (mask.astype(jnp.float32) - 1.0) * 1e9                  # (B, S)

    wqkv = jnp.concatenate([params["wq"], params["wk"], params["wv"]], axis=1)  # (H, 3H)
    small = _pack_small(params)                                                  # (8, 3H)

    # Single kernel invocation: no grid, full arrays resident in VMEM
    # (total footprint ~30 KB << VMEM on v5e/v6e/v7x).
    # TODO(synk): if B scales up, reintroduce a batch-"parallel" grid axis so
    # v7x's second TensorCore gets work.
    out2d = pl.pallas_call(
        encoder_kernel,
        out_shape=jax.ShapeDtypeStruct((B * S, H), jnp.float32),
    )(x2d, neg_bias, wqkv, params["wo"], params["w1"], params["w2"], small)

    return out2d.reshape(B, S, H), lengths


# ----------------------- pure-JAX reference (for checking) -------------------
def reference_forward(input_ids, attention_mask, params):
    x = params["tok_emb"][input_ids] + params["pos_emb"][None, :, :]
    mask_f = attention_mask.astype(jnp.float32)
    lengths = attention_mask.astype(jnp.int32).sum(axis=-1)

    def one(xb, mb):
        q = xb @ params["wq"] + params["bq"]
        k = xb @ params["wk"] + params["bk"]
        v = xb @ params["wv"] + params["bv"]
        neg = (mb - 1.0) * 1e9
        outs = []
        for h in range(NUM_HEADS):
            lo, hi = h * HEAD_DIM, (h + 1) * HEAD_DIM
            sc = (q[:, lo:hi] @ k[:, lo:hi].T) / math.sqrt(HEAD_DIM) + neg[None, :]
            p = jax.nn.softmax(sc, axis=-1)
            outs.append(p @ v[:, lo:hi])
        attn = jnp.concatenate(outs, axis=-1) @ params["wo"] + params["bo"]
        h1 = xb + attn
        h1n = ((h1 - h1.mean(-1, keepdims=True))
               * jax.lax.rsqrt(h1.var(-1, keepdims=True) + LN_EPS)
               * params["ln1g"] + params["ln1b"])
        f = _gelu_tanh(h1n @ params["w1"] + params["b1"]) @ params["w2"] + params["b2"]
        h2 = h1n + f
        return ((h2 - h2.mean(-1, keepdims=True))
                * jax.lax.rsqrt(h2.var(-1, keepdims=True) + LN_EPS)
                * params["ln2g"] + params["ln2b"])

    out = jax.vmap(one)(x, mask_f)
    return out, lengths


# --------------------------------- main ---------------------------------------
def make_params(key):
    ks = jax.random.split(key, 12)
    s = 0.02
    p = {
        "tok_emb": jax.random.normal(ks[0], (VOCAB, H), jnp.float32) * s,
        "pos_emb": jax.random.normal(ks[1], (S, H), jnp.float32) * s,
        "wq": jax.random.normal(ks[2], (H, H), jnp.float32) * s,
        "wk": jax.random.normal(ks[3], (H, H), jnp.float32) * s,
        "wv": jax.random.normal(ks[4], (H, H), jnp.float32) * s,
        "wo": jax.random.normal(ks[5], (H, H), jnp.float32) * s,
        "w1": jax.random.normal(ks[6], (H, FFN), jnp.float32) * s,
        "w2": jax.random.normal(ks[7], (FFN, H), jnp.float32) * s,
        "bq": jnp.zeros((1, H), jnp.float32),
        "bk": jnp.zeros((1, H), jnp.float32),
        "bv": jnp.zeros((1, H), jnp.float32),
        "bo": jnp.zeros((1, H), jnp.float32),
        "b1": jnp.zeros((1, FFN), jnp.float32),
        "b2": jnp.zeros((1, H), jnp.float32),
        "ln1g": jnp.ones((1, H), jnp.float32),
        "ln1b": jnp.zeros((1, H), jnp.float32),
        "ln2g": jnp.ones((1, H), jnp.float32),
        "ln2b": jnp.zeros((1, H), jnp.float32),
    }
    return p


if __name__ == "__main__":
    key = jax.random.PRNGKey(0)
    kp, ki = jax.random.split(key)
    params = make_params(kp)

    input_ids = jax.random.randint(ki, (B, S), 0, VOCAB, dtype=jnp.int32)
    # batch element 0: full length S; batch element 1: length 5 (3 pad tokens)
    attention_mask = jnp.array(
        [[1] * S,
         [1, 1, 1, 1, 1, 0, 0, 0]], dtype=jnp.int32)

    out, lengths = transformers_wrapper_forward(input_ids, attention_mask, params)
    jax.block_until_ready((out, lengths))

    ref_out, ref_len = reference_forward(input_ids, attention_mask, params)
    assert out.shape == (B, S, H) and lengths.shape == (B,)
    assert jnp.array_equal(lengths, ref_len)
    assert jnp.allclose(out, ref_out, rtol=1e-4, atol=1e-4)

    print("KERNEL_OK")
</pallas_src>

<mosaic_0001>
module attributes {stable_mosaic.version = 11 : i64} {
  func.func @encoder_kernel(%arg0: memref<16x32xf32, #tpu.memory_space<vmem>>, %arg1: memref<2x8xf32, #tpu.memory_space<vmem>>, %arg2: memref<32x96xf32, #tpu.memory_space<vmem>>, %arg3: memref<32x32xf32, #tpu.memory_space<vmem>>, %arg4: memref<32x64xf32, #tpu.memory_space<vmem>>, %arg5: memref<64x32xf32, #tpu.memory_space<vmem>>, %arg6: memref<8x96xf32, #tpu.memory_space<vmem>>, %arg7: memref<16x32xf32, #tpu.memory_space<vmem>>) attributes {dimension_semantics = [], scalar_prefetch = 0 : i64, scratch_operands = 0 : i64, tpu.core_type = #tpu.core_type<tc>} {
    %c0 = arith.constant 0 : index
    %c0_0 = arith.constant 0 : index
    %0 = vector.load %arg0[%c0, %c0_0] : memref<16x32xf32, #tpu.memory_space<vmem>>, vector<16x32xf32>
    %c0_1 = arith.constant 0 : index
    %c0_2 = arith.constant 0 : index
    %1 = vector.load %arg6[%c0_1, %c0_2] : memref<8x96xf32, #tpu.memory_space<vmem>>, vector<8x96xf32>
    %2 = vector.extract_strided_slice %1 {offsets = [0, 0], sizes = [1, 96], strides = [1, 1]} : vector<8x96xf32> to vector<1x96xf32>
    %3 = vector.extract_strided_slice %1 {offsets = [1, 0], sizes = [1, 32], strides = [1, 1]} : vector<8x96xf32> to vector<1x32xf32>
    %4 = vector.extract_strided_slice %1 {offsets = [2, 0], sizes = [1, 64], strides = [1, 1]} : vector<8x96xf32> to vector<1x64xf32>
    %5 = vector.extract_strided_slice %1 {offsets = [3, 0], sizes = [1, 32], strides = [1, 1]} : vector<8x96xf32> to vector<1x32xf32>
    %6 = vector.extract_strided_slice %1 {offsets = [4, 0], sizes = [1, 32], strides = [1, 1]} : vector<8x96xf32> to vector<1x32xf32>
    %7 = vector.extract_strided_slice %1 {offsets = [5, 0], sizes = [1, 32], strides = [1, 1]} : vector<8x96xf32> to vector<1x32xf32>
    %8 = vector.extract_strided_slice %1 {offsets = [6, 0], sizes = [1, 32], strides = [1, 1]} : vector<8x96xf32> to vector<1x32xf32>
    %9 = vector.extract_strided_slice %1 {offsets = [7, 0], sizes = [1, 32], strides = [1, 1]} : vector<8x96xf32> to vector<1x32xf32>
    %c0_3 = arith.constant 0 : index
    %c0_4 = arith.constant 0 : index
    %10 = vector.load %arg2[%c0_3, %c0_4] : memref<32x96xf32, #tpu.memory_space<vmem>>, vector<32x96xf32>
    %cst = arith.constant dense<0.000000e+00> : vector<16x96xf32>
    %11 = tpu.matmul %0, %10, %cst {dimension_numbers = #tpu.dot_dimension_numbers<[1], [0], [0], [1], [0, 0, 1, 1], [], []>} : vector<16x32xf32>, vector<32x96xf32>, vector<16x96xf32> -> vector<16x96xf32>
    %12 = vector.broadcast %2 : vector<1x96xf32> to vector<16x96xf32>
    %13 = arith.addf %11, %12 : vector<16x96xf32>
    %14 = vector.extract_strided_slice %13 {offsets = [0, 0], sizes = [16, 32], strides = [1, 1]} : vector<16x96xf32> to vector<16x32xf32>
    %15 = vector.extract_strided_slice %13 {offsets = [0, 32], sizes = [16, 32], strides = [1, 1]} : vector<16x96xf32> to vector<16x32xf32>
    %16 = vector.extract_strided_slice %13 {offsets = [0, 64], sizes = [16, 32], strides = [1, 1]} : vector<16x96xf32> to vector<16x32xf32>
    %c0_5 = arith.constant 0 : index
    %c0_6 = arith.constant 0 : index
    %17 = vector.load %arg1[%c0_5, %c0_6] : memref<2x8xf32, #tpu.memory_space<vmem>>, vector<2x8xf32>
    %18 = vector.extract_strided_slice %14 {offsets = [0, 0], sizes = [8, 32], strides = [1, 1]} : vector<16x32xf32> to vector<8x32xf32>
    %19 = vector.extract_strided_slice %15 {offsets = [0, 0], sizes = [8, 32], strides = [1, 1]} : vector<16x32xf32> to vector<8x32xf32>
    %20 = vector.extract_strided_slice %16 {offsets = [0, 0], sizes = [8, 32], strides = [1, 1]} : vector<16x32xf32> to vector<8x32xf32>
    %21 = vector.extract_strided_slice %17 {offsets = [0, 0], sizes = [1, 8], strides = [1, 1]} : vector<2x8xf32> to vector<1x8xf32>
    %22 = vector.extract_strided_slice %18 {offsets = [0, 0], sizes = [8, 16], strides = [1, 1]} : vector<8x32xf32> to vector<8x16xf32>
    %23 = vector.extract_strided_slice %19 {offsets = [0, 0], sizes = [8, 16], strides = [1, 1]} : vector<8x32xf32> to vector<8x16xf32>
    %24 = tpu.transpose %23, [1, 0] : vector<8x16xf32> -> vector<16x8xf32>
    %cst_7 = arith.constant dense<0.000000e+00> : vector<8x8xf32>
    %25 = tpu.matmul %22, %24, %cst_7 {dimension_numbers = #tpu.dot_dimension_numbers<[1], [0], [0], [1], [0, 0, 1, 1], [], []>} : vector<8x16xf32>, vector<16x8xf32>, vector<8x8xf32> -> vector<8x8xf32>
    %cst_8 = arith.constant 2.500000e-01 : f32
    %26 = vector.broadcast %cst_8 : f32 to vector<8x8xf32>
    %27 = arith.mulf %25, %26 : vector<8x8xf32>
    %28 = vector.broadcast %21 : vector<1x8xf32> to vector<8x8xf32>
    %29 = arith.addf %27, %28 : vector<8x8xf32>
    %cst_9 = arith.constant dense<0xFF800000> : vector<8xf32>
    %30 = vector.multi_reduction <maximumf>, %29, %cst_9 [1] : vector<8x8xf32> to vector<8xf32>
    %31 = vector.shape_cast %30 : vector<8xf32> to vector<8x1xf32>
    %32 = vector.broadcast %31 : vector<8x1xf32> to vector<8x8xf32>
    %33 = arith.subf %29, %32 : vector<8x8xf32>
    %34 = math.exp %33 : vector<8x8xf32>
    %cst_10 = arith.constant dense<0.000000e+00> : vector<8xf32>
    %35 = vector.multi_reduction <add>, %34, %cst_10 [1] : vector<8x8xf32> to vector<8xf32>
    %36 = vector.shape_cast %35 : vector<8xf32> to vector<8x1xf32>
    %37 = tpu.reciprocal %36 {approx = true} : vector<8x1xf32> -> vector<8x1xf32>
    %38 = vector.broadcast %37 : vector<8x1xf32> to vector<8x8xf32>
    %39 = arith.mulf %34, %38 : vector<8x8xf32>
    %40 = vector.extract_strided_slice %20 {offsets = [0, 0], sizes = [8, 16], strides = [1, 1]} : vector<8x32xf32> to vector<8x16xf32>
    %cst_11 = arith.constant dense<0.000000e+00> : vector<8x16xf32>
    %41 = tpu.matmul %39, %40, %cst_11 {dimension_numbers = #tpu.dot_dimension_numbers<[1], [0], [0], [1], [0, 0, 1, 1], [], []>} : vector<8x8xf32>, vector<8x16xf32>, vector<8x16xf32> -> vector<8x16xf32>
    %42 = vector.extract_strided_slice %18 {offsets = [0, 16], sizes = [8, 16], strides = [1, 1]} : vector<8x32xf32> to vector<8x16xf32>
    %43 = vector.extract_strided_slice %19 {offsets = [0, 16], sizes = [8, 16], strides = [1, 1]} : vector<8x32xf32> to vector<8x16xf32>
    %44 = tpu.transpose %43, [1, 0] : vector<8x16xf32> -> vector<16x8xf32>
    %cst_12 = arith.constant dense<0.000000e+00> : vector<8x8xf32>
    %45 = tpu.matmul %42, %44, %cst_12 {dimension_numbers = #tpu.dot_dimension_numbers<[1], [0], [0], [1], [0, 0, 1, 1], [], []>} : vector<8x16xf32>, vector<16x8xf32>, vector<8x8xf32> -> vector<8x8xf32>
    %cst_13 = arith.constant 2.500000e-01 : f32
    %46 = vector.broadcast %cst_13 : f32 to vector<8x8xf32>
    %47 = arith.mulf %45, %46 : vector<8x8xf32>
    %48 = vector.broadcast %21 : vector<1x8xf32> to vector<8x8xf32>
    %49 = arith.addf %47, %48 : vector<8x8xf32>
    %cst_14 = arith.constant dense<0xFF800000> : vector<8xf32>
    %50 = vector.multi_reduction <maximumf>, %49, %cst_14 [1] : vector<8x8xf32> to vector<8xf32>
    %51 = vector.shape_cast %50 : vector<8xf32> to vector<8x1xf32>
    %52 = vector.broadcast %51 : vector<8x1xf32> to vector<8x8xf32>
    %53 = arith.subf %49, %52 : vector<8x8xf32>
    %54 = math.exp %53 : vector<8x8xf32>
    %cst_15 = arith.constant dense<0.000000e+00> : vector<8xf32>
    %55 = vector.multi_reduction <add>, %54, %cst_15 [1] : vector<8x8xf32> to vector<8xf32>
    %56 = vector.shape_cast %55 : vector<8xf32> to vector<8x1xf32>
    %57 = tpu.reciprocal %56 {approx = true} : vector<8x1xf32> -> vector<8x1xf32>
    %58 = vector.broadcast %57 : vector<8x1xf32> to vector<8x8xf32>
    %59 = arith.mulf %54, %58 : vector<8x8xf32>
    %60 = vector.extract_strided_slice %20 {offsets = [0, 16], sizes = [8, 16], strides = [1, 1]} : vector<8x32xf32> to vector<8x16xf32>
    %cst_16 = arith.constant dense<0.000000e+00> : vector<8x16xf32>
    %61 = tpu.matmul %59, %60, %cst_16 {dimension_numbers = #tpu.dot_dimension_numbers<[1], [0], [0], [1], [0, 0, 1, 1], [], []>} : vector<8x8xf32>, vector<8x16xf32>, vector<8x16xf32> -> vector<8x16xf32>
    %62 = tpu.concatenate %41, %61 in 1 : vector<8x16xf32>, vector<8x16xf32> -> vector<8x32xf32>
    %63 = vector.extract_strided_slice %14 {offsets = [8, 0], sizes = [8, 32], strides = [1, 1]} : vector<16x32xf32> to vector<8x32xf32>
    %64 = vector.extract_strided_slice %15 {offsets = [8, 0], sizes = [8, 32], strides = [1, 1]} : vector<16x32xf32> to vector<8x32xf32>
    %65 = vector.extract_strided_slice %16 {offsets = [8, 0], sizes = [8, 32], strides = [1, 1]} : vector<16x32xf32> to vector<8x32xf32>
    %66 = vector.extract_strided_slice %17 {offsets = [1, 0], sizes = [1, 8], strides = [1, 1]} : vector<2x8xf32> to vector<1x8xf32>
    %67 = vector.extract_strided_slice %63 {offsets = [0, 0], sizes = [8, 16], strides = [1, 1]} : vector<8x32xf32> to vector<8x16xf32>
    %68 = vector.extract_strided_slice %64 {offsets = [0, 0], sizes = [8, 16], strides = [1, 1]} : vector<8x32xf32> to vector<8x16xf32>
    %69 = tpu.transpose %68, [1, 0] : vector<8x16xf32> -> vector<16x8xf32>
    %cst_17 = arith.constant dense<0.000000e+00> : vector<8x8xf32>
    %70 = tpu.matmul %67, %69, %cst_17 {dimension_numbers = #tpu.dot_dimension_numbers<[1], [0], [0], [1], [0, 0, 1, 1], [], []>} : vector<8x16xf32>, vector<16x8xf32>, vector<8x8xf32> -> vector<8x8xf32>
    %cst_18 = arith.constant 2.500000e-01 : f32
    %71 = vector.broadcast %cst_18 : f32 to vector<8x8xf32>
    %72 = arith.mulf %70, %71 : vector<8x8xf32>
    %73 = vector.broadcast %66 : vector<1x8xf32> to vector<8x8xf32>
    %74 = arith.addf %72, %73 : vector<8x8xf32>
    %cst_19 = arith.constant dense<0xFF800000> : vector<8xf32>
    %75 = vector.multi_reduction <maximumf>, %74, %cst_19 [1] : vector<8x8xf32> to vector<8xf32>
    %76 = vector.shape_cast %75 : vector<8xf32> to vector<8x1xf32>
    %77 = vector.broadcast %76 : vector<8x1xf32> to vector<8x8xf32>
    %78 = arith.subf %74, %77 : vector<8x8xf32>
    %79 = math.exp %78 : vector<8x8xf32>
    %cst_20 = arith.constant dense<0.000000e+00> : vector<8xf32>
    %80 = vector.multi_reduction <add>, %79, %cst_20 [1] : vector<8x8xf32> to vector<8xf32>
    %81 = vector.shape_cast %80 : vector<8xf32> to vector<8x1xf32>
    %82 = tpu.reciprocal %81 {approx = true} : vector<8x1xf32> -> vector<8x1xf32>
    %83 = vector.broadcast %82 : vector<8x1xf32> to vector<8x8xf32>
    %84 = arith.mulf %79, %83 : vector<8x8xf32>
    %85 = vector.extract_strided_slice %65 {offsets = [0, 0], sizes = [8, 16], strides = [1, 1]} : vector<8x32xf32> to vector<8x16xf32>
    %cst_21 = arith.constant dense<0.000000e+00> : vector<8x16xf32>
    %86 = tpu.matmul %84, %85, %cst_21 {dimension_numbers = #tpu.dot_dimension_numbers<[1], [0], [0], [1], [0, 0, 1, 1], [], []>} : vector<8x8xf32>, vector<8x16xf32>, vector<8x16xf32> -> vector<8x16xf32>
    %87 = vector.extract_strided_slice %63 {offsets = [0, 16], sizes = [8, 16], strides = [1, 1]} : vector<8x32xf32> to vector<8x16xf32>
    %88 = vector.extract_strided_slice %64 {offsets = [0, 16], sizes = [8, 16], strides = [1, 1]} : vector<8x32xf32> to vector<8x16xf32>
    %89 = tpu.transpose %88, [1, 0] : vector<8x16xf32> -> vector<16x8xf32>
    %cst_22 = arith.constant dense<0.000000e+00> : vector<8x8xf32>
    %90 = tpu.matmul %87, %89, %cst_22 {dimension_numbers = #tpu.dot_dimension_numbers<[1], [0], [0], [1], [0, 0, 1, 1], [], []>} : vector<8x16xf32>, vector<16x8xf32>, vector<8x8xf32> -> vector<8x8xf32>
    %cst_23 = arith.constant 2.500000e-01 : f32
    %91 = vector.broadcast %cst_23 : f32 to vector<8x8xf32>
    %92 = arith.mulf %90, %91 : vector<8x8xf32>
    %93 = vector.broadcast %66 : vector<1x8xf32> to vector<8x8xf32>
    %94 = arith.addf %92, %93 : vector<8x8xf32>
    %cst_24 = arith.constant dense<0xFF800000> : vector<8xf32>
    %95 = vector.multi_reduction <maximumf>, %94, %cst_24 [1] : vector<8x8xf32> to vector<8xf32>
    %96 = vector.shape_cast %95 : vector<8xf32> to vector<8x1xf32>
    %97 = vector.broadcast %96 : vector<8x1xf32> to vector<8x8xf32>
    %98 = arith.subf %94, %97 : vector<8x8xf32>
    %99 = math.exp %98 : vector<8x8xf32>
    %cst_25 = arith.constant dense<0.000000e+00> : vector<8xf32>
    %100 = vector.multi_reduction <add>, %99, %cst_25 [1] : vector<8x8xf32> to vector<8xf32>
    %101 = vector.shape_cast %100 : vector<8xf32> to vector<8x1xf32>
    %102 = tpu.reciprocal %101 {approx = true} : vector<8x1xf32> -> vector<8x1xf32>
    %103 = vector.broadcast %102 : vector<8x1xf32> to vector<8x8xf32>
    %104 = arith.mulf %99, %103 : vector<8x8xf32>
    %105 = vector.extract_strided_slice %65 {offsets = [0, 16], sizes = [8, 16], strides = [1, 1]} : vector<8x32xf32> to vector<8x16xf32>
    %cst_26 = arith.constant dense<0.000000e+00> : vector<8x16xf32>
    %106 = tpu.matmul %104, %105, %cst_26 {dimension_numbers = #tpu.dot_dimension_numbers<[1], [0], [0], [1], [0, 0, 1, 1], [], []>} : vector<8x8xf32>, vector<8x16xf32>, vector<8x16xf32> -> vector<8x16xf32>
    %107 = tpu.concatenate %86, %106 in 1 : vector<8x16xf32>, vector<8x16xf32> -> vector<8x32xf32>
    %108 = tpu.concatenate %62, %107 in 0 : vector<8x32xf32>, vector<8x32xf32> -> vector<16x32xf32>
    %c0_27 = arith.constant 0 : index
    %c0_28 = arith.constant 0 : index
    %109 = vector.load %arg3[%c0_27, %c0_28] : memref<32x32xf32, #tpu.memory_space<vmem>>, vector<32x32xf32>
    %cst_29 = arith.constant dense<0.000000e+00> : vector<16x32xf32>
    %110 = tpu.matmul %108, %109, %cst_29 {dimension_numbers = #tpu.dot_dimension_numbers<[1], [0], [0], [1], [0, 0, 1, 1], [], []>} : vector<16x32xf32>, vector<32x32xf32>, vector<16x32xf32> -> vector<16x32xf32>
    %111 = vector.broadcast %3 : vector<1x32xf32> to vector<16x32xf32>
    %112 = arith.addf %110, %111 : vector<16x32xf32>
    %113 = arith.addf %0, %112 : vector<16x32xf32>
    %cst_30 = arith.constant dense<0.000000e+00> : vector<16xf32>
    %114 = vector.multi_reduction <add>, %113, %cst_30 [1] : vector<16x32xf32> to vector<16xf32>
    %115 = vector.shape_cast %114 : vector<16xf32> to vector<16x1xf32>
    %cst_31 = arith.constant 3.200000e+01 : f32
    %116 = vector.broadcast %cst_31 : f32 to vector<16x1xf32>
    %117 = arith.divf %115, %116 : vector<16x1xf32>
    %118 = vector.broadcast %117 : vector<16x1xf32> to vector<16x32xf32>
    %119 = arith.subf %113, %118 : vector<16x32xf32>
    %120 = vector.broadcast %117 : vector<16x1xf32> to vector<16x32xf32>
    %121 = arith.subf %113, %120 : vector<16x32xf32>
    %122 = arith.mulf %119, %121 : vector<16x32xf32>
    %cst_32 = arith.constant dense<0.000000e+00> : vector<16xf32>
    %123 = vector.multi_reduction <add>, %122, %cst_32 [1] : vector<16x32xf32> to vector<16xf32>
    %124 = vector.shape_cast %123 : vector<16xf32> to vector<16x1xf32>
    %cst_33 = arith.constant 3.200000e+01 : f32
    %125 = vector.broadcast %cst_33 : f32 to vector<16x1xf32>
    %126 = arith.divf %124, %125 : vector<16x1xf32>
    %127 = vector.broadcast %117 : vector<16x1xf32> to vector<16x32xf32>
    %128 = arith.subf %113, %127 : vector<16x32xf32>
    %cst_34 = arith.constant 9.99999996E-13 : f32
    %129 = vector.broadcast %cst_34 : f32 to vector<16x1xf32>
    %130 = arith.addf %126, %129 : vector<16x1xf32>
    %131 = math.rsqrt %130 : vector<16x1xf32>
    %132 = vector.broadcast %131 : vector<16x1xf32> to vector<16x32xf32>
    %133 = arith.mulf %128, %132 : vector<16x32xf32>
    %134 = vector.broadcast %6 : vector<1x32xf32> to vector<16x32xf32>
    %135 = arith.mulf %133, %134 : vector<16x32xf32>
    %136 = vector.broadcast %7 : vector<1x32xf32> to vector<16x32xf32>
    %137 = arith.addf %135, %136 : vector<16x32xf32>
    %c0_35 = arith.constant 0 : index
    %c0_36 = arith.constant 0 : index
    %138 = vector.load %arg4[%c0_35, %c0_36] : memref<32x64xf32, #tpu.memory_space<vmem>>, vector<32x64xf32>
    %cst_37 = arith.constant dense<0.000000e+00> : vector<16x64xf32>
    %139 = tpu.matmul %137, %138, %cst_37 {dimension_numbers = #tpu.dot_dimension_numbers<[1], [0], [0], [1], [0, 0, 1, 1], [], []>} : vector<16x32xf32>, vector<32x64xf32>, vector<16x64xf32> -> vector<16x64xf32>
    %140 = vector.broadcast %4 : vector<1x64xf32> to vector<16x64xf32>
    %141 = arith.addf %139, %140 : vector<16x64xf32>
    %cst_38 = arith.constant 5.000000e-01 : f32
    %142 = vector.broadcast %cst_38 : f32 to vector<16x64xf32>
    %143 = arith.mulf %142, %141 : vector<16x64xf32>
    %cst_39 = arith.constant 4.471500e-02 : f32
    %144 = vector.broadcast %cst_39 : f32 to vector<16x64xf32>
    %145 = arith.mulf %144, %141 : vector<16x64xf32>
    %146 = arith.mulf %145, %141 : vector<16x64xf32>
    %147 = arith.mulf %146, %141 : vector<16x64xf32>
    %148 = arith.addf %141, %147 : vector<16x64xf32>
    %cst_40 = arith.constant 0.797884583 : f32
    %149 = vector.broadcast %cst_40 : f32 to vector<16x64xf32>
    %150 = arith.mulf %149, %148 : vector<16x64xf32>
    %151 = math.tanh %150 : vector<16x64xf32>
    %cst_41 = arith.constant 1.000000e+00 : f32
    %152 = vector.broadcast %cst_41 : f32 to vector<16x64xf32>
    %153 = arith.addf %152, %151 : vector<16x64xf32>
    %154 = arith.mulf %143, %153 : vector<16x64xf32>
    %c0_42 = arith.constant 0 : index
    %c0_43 = arith.constant 0 : index
    %155 = vector.load %arg5[%c0_42, %c0_43] : memref<64x32xf32, #tpu.memory_space<vmem>>, vector<64x32xf32>
    %cst_44 = arith.constant dense<0.000000e+00> : vector<16x32xf32>
    %156 = tpu.matmul %154, %155, %cst_44 {dimension_numbers = #tpu.dot_dimension_numbers<[1], [0], [0], [1], [0, 0, 1, 1], [], []>} : vector<16x64xf32>, vector<64x32xf32>, vector<16x32xf32> -> vector<16x32xf32>
    %157 = vector.broadcast %5 : vector<1x32xf32> to vector<16x32xf32>
    %158 = arith.addf %156, %157 : vector<16x32xf32>
    %159 = arith.addf %137, %158 : vector<16x32xf32>
    %cst_45 = arith.constant dense<0.000000e+00> : vector<16xf32>
    %160 = vector.multi_reduction <add>, %159, %cst_45 [1] : vector<16x32xf32> to vector<16xf32>
    %161 = vector.shape_cast %160 : vector<16xf32> to vector<16x1xf32>
    %cst_46 = arith.constant 3.200000e+01 : f32
    %162 = vector.broadcast %cst_46 : f32 to vector<16x1xf32>
    %163 = arith.divf %161, %162 : vector<16x1xf32>
    %164 = vector.broadcast %163 : vector<16x1xf32> to vector<16x32xf32>
    %165 = arith.subf %159, %164 : vector<16x32xf32>
    %166 = vector.broadcast %163 : vector<16x1xf32> to vector<16x32xf32>
    %167 = arith.subf %159, %166 : vector<16x32xf32>
    %168 = arith.mulf %165, %167 : vector<16x32xf32>
    %cst_47 = arith.constant dense<0.000000e+00> : vector<16xf32>
    %169 = vector.multi_reduction <add>, %168, %cst_47 [1] : vector<16x32xf32> to vector<16xf32>
    %170 = vector.shape_cast %169 : vector<16xf32> to vector<16x1xf32>
    %cst_48 = arith.constant 3.200000e+01 : f32
    %171 = vector.broadcast %cst_48 : f32 to vector<16x1xf32>
    %172 = arith.divf %170, %171 : vector<16x1xf32>
    %173 = vector.broadcast %163 : vector<16x1xf32> to vector<16x32xf32>
    %174 = arith.subf %159, %173 : vector<16x32xf32>
    %cst_49 = arith.constant 9.99999996E-13 : f32
    %175 = vector.broadcast %cst_49 : f32 to vector<16x1xf32>
    %176 = arith.addf %172, %175 : vector<16x1xf32>
    %177 = math.rsqrt %176 : vector<16x1xf32>
    %178 = vector.broadcast %177 : vector<16x1xf32> to vector<16x32xf32>
    %179 = arith.mulf %174, %178 : vector<16x32xf32>
    %180 = vector.broadcast %8 : vector<1x32xf32> to vector<16x32xf32>
    %181 = arith.mulf %179, %180 : vector<16x32xf32>
    %182 = vector.broadcast %9 : vector<1x32xf32> to vector<16x32xf32>
    %183 = arith.addf %181, %182 : vector<16x32xf32>
    %c0_50 = arith.constant 0 : index
    %c0_51 = arith.constant 0 : index
    %184 = vector.load %arg7[%c0_50, %c0_51] : memref<16x32xf32, #tpu.memory_space<vmem>>, vector<16x32xf32>
    tpu.vector_store %arg7[%c0_50, %c0_51], %183 {strides = array<i32>} : memref<16x32xf32, #tpu.memory_space<vmem>>, vector<16x32xf32>,
    return
  }
}

</mosaic_0001>

<llo_original>
// kernel: transformers_wrapper_forward.1
$region0: #{transformers_wrapper_forward.1}
  #allocation0 [shape = 'u32[]', space=smem, size = 0x4, offset = 0x4, fixed_abs, tag = 'smem constant byte address 0x4 - core index']
  #allocation1 [shape = 'u32[144,128]{1,0:T(1,128)}', space=vmem, size = 0x12000, scoped, tag = 'internal scratch']
  %s0 = inlined_call_operand.vmem [shape: f32[16,32], index: 0, kind: input, shape index: {}]
  %s1 = inlined_call_operand.vmem [shape: f32[2,8], index: 1, kind: input, shape index: {}]
  %s2 = inlined_call_operand.vmem [shape: f32[32,96], index: 2, kind: input, shape index: {}]
  %s3 = inlined_call_operand.vmem [shape: f32[32,32], index: 3, kind: input, shape index: {}]
  %s4 = inlined_call_operand.vmem [shape: f32[32,64], index: 4, kind: input, shape index: {}]
  %s5 = inlined_call_operand.vmem [shape: f32[64,32], index: 5, kind: input, shape index: {}]
  %s6 = inlined_call_operand.vmem [shape: f32[8,96], index: 6, kind: input, shape index: {}]
  %s7 = inlined_call_operand.hbm [shape: f32[16,32], index: 7, kind: output, shape index: {}]
  %s8 = sld [smem:[#allocation0]]
  $region38: #{transformers_wrapper_forward.1} parent=0
    _
  %s10 = ssub.s32 1, %s8
  %s11 = scalar_select 0, %s10, %s8
  $region1: #{transformers_wrapper_forward.1} parent=0
    #allocation2 [shape = 'u8[8192]{0}', space=vmem, size = 0x2000, scoped, tag = 'output window, operand 0, single buffered']
    #allocation3 [shape = 's32[1]{0}', space=sflag, size = 0x4, scoped, tag = 'scoped memory for transformers_wrapper_forward.1']
    %12 = vsyncpa [#allocation3], 0
    // Predicated region
    $region2: #{transformers_wrapper_forward.1} parent=1 // pred_check
      _
    $region3: #{transformers_wrapper_forward.1} parent=1 // pred_check_branch
      %14 = sbr.rel (0) target = $region5
    $region4: #{transformers_wrapper_forward.1} parent=1 // pred_region
      _
    $region5: #{transformers_wrapper_forward.1} parent=1 // pred_fallthru
      _
    // Predicated region
    $region6: #{transformers_wrapper_forward.1} parent=1 // pred_check
      _
    $region7: #{transformers_wrapper_forward.1} parent=1 // pred_check_branch
      %16 = sbr.rel (0) target = $region9
    $region8: #{transformers_wrapper_forward.1} parent=1 // pred_region
      _
    $region9: #{transformers_wrapper_forward.1} parent=1 // pred_fallthru
      _
    // Predicated region
    $region10: #{transformers_wrapper_forward.1} parent=1 // pred_check
      _
    $region11: #{transformers_wrapper_forward.1} parent=1 // pred_check_branch
      %18 = sbr.rel (0) target = $region13
    $region12: #{transformers_wrapper_forward.1} parent=1 // pred_region
      _
    $region13: #{transformers_wrapper_forward.1} parent=1 // pred_fallthru
      _
    // Predicated region
    $region14: #{transformers_wrapper_forward.1} parent=1 // pred_check
      _
    $region15: #{transformers_wrapper_forward.1} parent=1 // pred_check_branch
      %20 = sbr.rel (0) target = $region17
    $region16: #{transformers_wrapper_forward.1} parent=1 // pred_region
      _
    $region17: #{transformers_wrapper_forward.1} parent=1 // pred_fallthru
      _
    // Predicated region
    $region18: #{transformers_wrapper_forward.1} parent=1 // pred_check
      _
    $region19: #{transformers_wrapper_forward.1} parent=1 // pred_check_branch
      %22 = sbr.rel (0) target = $region21
    $region20: #{transformers_wrapper_forward.1} parent=1 // pred_region
      _
    $region21: #{transformers_wrapper_forward.1} parent=1 // pred_fallthru
      _
    // Predicated region
    $region22: #{transformers_wrapper_forward.1} parent=1 // pred_check
      _
    $region23: #{transformers_wrapper_forward.1} parent=1 // pred_check_branch
      %24 = sbr.rel (0) target = $region25
    $region24: #{transformers_wrapper_forward.1} parent=1 // pred_region
      _
    $region25: #{transformers_wrapper_forward.1} parent=1 // pred_fallthru
      _
    // Predicated region
    $region26: #{transformers_wrapper_forward.1} parent=1 // pred_check
      _
    $region27: #{transformers_wrapper_forward.1} parent=1 // pred_check_branch
      %26 = sbr.rel (0) target = $region29
    $region28: #{transformers_wrapper_forward.1} parent=1 // pred_region
      _
    $region29: #{transformers_wrapper_forward.1} parent=1 // pred_fallthru
      _
    %v27 = vld [vmem:[%s0] sm:$0xff]
    %v28 = vld [vmem:[%s0 + $0x8] sm:$0xff]
    %v29 = vld [vmem:[%s6] sm:$0xff]
    %v30 = vld [vmem:[%s2] sm:$0xff]
    %v31 = vld [vmem:[%s2 + $0x8] sm:$0xff]
    %v32 = vld [vmem:[%s2 + $0x10] sm:$0xff]
    %v33 = vld [vmem:[%s2 + $0x18] sm:$0xff]
    %v34 = vlaneseq
    %v35 = vshrl.u32 %v34, 7
    %v36 = vsub.s32 0, %v35
    %v37 = vrot.slane %v29, %v36
    %vm38 = vcmask 261120
    %v40 = vsel %vm38, %v27, 0
    %v43 = vsel %vm38, %v28, 0
    %45 = vmatprep.subr.mxu0 0.0
    %46 = vmatpush1.msra.mxu0 %v30
    %47 = vmatprep.subr.mxu0 0.0
    %48 = vmatpush1.msra.mxu0 %v31
    %49 = vmatprep.subr.mxu0 0.0
    %50 = vmatpush1.msra.mxu0 %v32
    %51 = vmatprep.subr.mxu0 0.0
    %52 = vmatpush1.msra.mxu0 %v33
    %53 = vmatprep.subr.mxu0 0.0
    %54 = vmatpush1.msra.mxu0 0.0
    %55 = vmatprep.subr.mxu0 0.0
    %56 = vmatpush1.msra.mxu0 0.0
    %57 = vmatprep.subr.mxu0 0.0
    %58 = vmatpush1.msra.mxu0 0.0
    %59 = vmatprep.subr.mxu0 0.0
    %60 = vmatpush1.msra.mxu0 0.0
    %61 = vmatprep.subr.mxu0 0.0
    %62 = vmatpush1.msra.mxu0 0.0
    %63 = vmatprep.subr.mxu0 0.0
    %64 = vmatpush1.msra.mxu0 0.0
    %65 = vmatprep.subr.mxu0 0.0
    %66 = vmatpush1.msra.mxu0 0.0
    %67 = vmatprep.subr.mxu0 0.0
    %68 = vmatpush1.msra.mxu0 0.0
    %69 = vmatprep.subr.mxu0 0.0
    %70 = vmatpush1.msra.mxu0 0.0
    %71 = vmatprep.subr.mxu0 0.0
    %72 = vmatpush1.msra.mxu0 0.0
    %73 = vmatprep.subr.mxu0 0.0
    %74 = vmatpush1.msra.mxu0 0.0
    %75 = vmatprep.subr.mxu0 0.0
    %76 = vmatpush1.msra.mxu0 0.0
    %77 = vmatprep.subr.mxu0 0.0
    %78 = vmatpush1.msra.mxu0 0.0
    %79 = vmatprep.subr.mxu0 0.0
    %80 = vmatpush1.msra.mxu0 0.0
    %81 = vmatprep.subr.mxu0 0.0
    %82 = vmatpush1.msra.mxu0 0.0
    %83 = vmatprep.subr.mxu0 0.0
    %84 = vmatpush1.msra.mxu0 0.0
    %85 = vmatprep.subr.mxu0 0.0
    %86 = vmatpush1.msra.mxu0 0.0
    %87 = vmatprep.subr.mxu0 0.0
    %88 = vmatpush1.msra.mxu0 0.0
    %89 = vmatprep.subr.mxu0 0.0
    %90 = vmatpush1.msra.mxu0 0.0
    %91 = vmatprep.subr.mxu0 0.0
    %92 = vmatpush1.msra.mxu0 0.0
    %93 = vmatprep.subr.mxu0 0.0
    %94 = vmatpush1.msra.mxu0 0.0
    %95 = vmatprep.subr.mxu0 0.0
    %96 = vmatpush1.msra.mxu0 0.0
    %97 = vmatprep.subr.mxu0 0.0
    %98 = vmatpush1.msra.mxu0 0.0
    %99 = vmatprep.subr.mxu0 0.0
    %100 = vmatpush1.msra.mxu0 0.0
    %101 = vmatprep.subr.mxu0 0.0
    %102 = vmatpush1.msra.mxu0 0.0
    %103 = vmatprep.subr.mxu0 0.0
    %104 = vmatpush1.msra.mxu0 0.0
    %105 = vmatprep.subr.mxu0 0.0
    %106 = vmatpush1.msra.mxu0 0.0
    %107 = vmatprep.subr.mxu0 0.0
    %108 = vmatpush1.msra.mxu0 0.0
    %109 = vmatprep.mubr.f32.mxu0 0.0
    %110 = vmatmul.mubr.f32.gmra.mrb[0].mxu0 %v40
    %v111 = vpop.f32.mrb[0].mxu0
    %v112 = vadd.f32 %v37, %v111
    %v113 = vpop.f32.mrb[0].mxu0
    %114 = vmatprep.mubr.f32.mxu0 0.0
    %115 = vmatmul.mubr.f32.gmra.mrb[0].mxu0 %v43
    %v116 = vpop.f32.mrb[0].mxu0
    %v117 = vadd.f32 %v37, %v116
    %v118 = vpop.f32.mrb[0].mxu0
    %119 = vdwg.mxu0
    %v120 = vld [vmem:[%s1] sm:$0x3]
    %122 = vrot.lane.b32.xlu0 %v112, 96
    %v123 = vpop.permute.xlu0 %122
    %vm124 = vcmask 130048
    %v125 = vsel %vm124, %v112, 0
    %v127 = vsel %vm124, %v123, 0
    %129 = vmatprep.subr.mxu0 0.0
    %130 = vmatpush1.xpose.msra.mxu0 %v127
    %131 = vmatprep.subr.mxu0 0.0
    %132 = vmatpush1.xpose.msra.mxu0 0.0
    %133 = vmatprep.subr.mxu0 0.0
    %134 = vmatpush1.xpose.msra.mxu0 0.0
    %135 = vmatprep.subr.mxu0 0.0
    %136 = vmatpush1.xpose.msra.mxu0 0.0
    %137 = vmatprep.subr.mxu0 0.0
    %138 = vmatpush1.xpose.msra.mxu0 0.0
    %139 = vmatprep.subr.mxu0 0.0
    %140 = vmatpush1.xpose.msra.mxu0 0.0
    %141 = vmatprep.subr.mxu0 0.0
    %142 = vmatpush1.xpose.msra.mxu0 0.0
    %143 = vmatprep.subr.mxu0 0.0
    %144 = vmatpush1.xpose.msra.mxu0 0.0
    %145 = vmatprep.subr.mxu0 0.0
    %146 = vmatpush1.xpose.msra.mxu0 0.0
    %147 = vmatprep.subr.mxu0 0.0
    %148 = vmatpush1.xpose.msra.mxu0 0.0
    %149 = vmatprep.subr.mxu0 0.0
    %150 = vmatpush1.xpose.msra.mxu0 0.0
    %151 = vmatprep.subr.mxu0 0.0
    %152 = vmatpush1.xpose.msra.mxu0 0.0
    %153 = vmatprep.subr.mxu0 0.0
    %154 = vmatpush1.xpose.msra.mxu0 0.0
    %155 = vmatprep.subr.mxu0 0.0
    %156 = vmatpush1.xpose.msra.mxu0 0.0
    %157 = vmatprep.subr.mxu0 0.0
    %158 = vmatpush1.xpose.msra.mxu0 0.0
    %159 = vmatprep.subr.mxu0 0.0
    %160 = vmatpush1.xpose.msra.mxu0 0.0
    %161 = vmatprep.subr.mxu0 0.0
    %162 = vmatpush1.xpose.msra.mxu0 0.0
    %163 = vmatprep.subr.mxu0 0.0
    %164 = vmatpush1.xpose.msra.mxu0 0.0
    %165 = vmatprep.subr.mxu0 0.0
    %166 = vmatpush1.xpose.msra.mxu0 0.0
    %167 = vmatprep.subr.mxu0 0.0
    %168 = vmatpush1.xpose.msra.mxu0 0.0
    %169 = vmatprep.subr.mxu0 0.0
    %170 = vmatpush1.xpose.msra.mxu0 0.0
    %171 = vmatprep.subr.mxu0 0.0
    %172 = vmatpush1.xpose.msra.mxu0 0.0
    %173 = vmatprep.subr.mxu0 0.0
    %174 = vmatpush1.xpose.msra.mxu0 0.0
    %175 = vmatprep.subr.mxu0 0.0
    %176 = vmatpush1.xpose.msra.mxu0 0.0
    %177 = vmatprep.subr.mxu0 0.0
    %178 = vmatpush1.xpose.msra.mxu0 0.0
    %179 = vmatprep.subr.mxu0 0.0
    %180 = vmatpush1.xpose.msra.mxu0 0.0
    %181 = vmatprep.subr.mxu0 0.0
    %182 = vmatpush1.xpose.msra.mxu0 0.0
    %183 = vmatprep.subr.mxu0 0.0
    %184 = vmatpush1.xpose.msra.mxu0 0.0
    %185 = vmatprep.subr.mxu0 0.0
    %186 = vmatpush1.xpose.msra.mxu0 0.0
    %187 = vmatprep.subr.mxu0 0.0
    %188 = vmatpush1.xpose.msra.mxu0 0.0
    %189 = vmatprep.subr.mxu0 0.0
    %190 = vmatpush1.xpose.msra.mxu0 0.0
    %191 = vmatprep.subr.mxu0 0.0
    %192 = vmatpush1.xpose.msra.mxu0 0.0
    %193 = vmatprep.mubr.f32.mxu0 0.0
    %194 = vmatmul.mubr.f32.gmra.mrb[0].mxu0 %v125
    %v195 = vpop.f32.mrb[0].mxu0
    %v196 = vadd.f32 0.0, %v195
    %v197 = vpop.f32.mrb[0].mxu0
    %198 = vdwg.mxu0
    %v199 = vmul.f32 %v196, 0.25
    %v200 = vlaneseq
    %v201 = vshrl.u32 %v200, 7
    %v202 = vsub.s32 0, %v201
    %v203 = vrot.slane %v120, %v202
    %v204 = vadd.f32 %v199, %v203
    %vm205 = vcmask 64512
    %v206 = vsel %vm205, %v204, -inf
    %207 = vmax.xlane.f32.xlu0 %v206
    %v208 = vpop.xlane.xlu0 %207
    %v209 = vsub.f32 %v204, %v208
    %v210 = vmul.f32 %v209, 1.442695
    %v211 = vpow.pop %v210
    %v212 = vsel %vm205, %v211, 0.0
    %213 = vadd.xlane.f32.xlu0 %v212
    %v214 = vpop.xlane.xlu0 %213
    %v215 = vrcp.pop %v214
    %v216 = vmul.f32 %v211, %v215
    %217 = vrot.lane.b32.xlu0 %v112, 64
    %v218 = vpop.permute.xlu0 %217
    %v221 = vsel %vm205, %v216, 0
    %223 = vmatprep.subr.mxu0 0.0
    %224 = vmatpush1.msra.mxu0 %v218
    %225 = vmatprep.subr.mxu0 0.0
    %226 = vmatpush1.msra.mxu0 0.0
    %227 = vmatprep.subr.mxu0 0.0
    %228 = vmatpush1.msra.mxu0 0.0
    %229 = vmatprep.subr.mxu0 0.0
    %230 = vmatpush1.msra.mxu0 0.0
    %231 = vmatprep.subr.mxu0 0.0
    %232 = vmatpush1.msra.mxu0 0.0
    %233 = vmatprep.subr.mxu0 0.0
    %234 = vmatpush1.msra.mxu0 0.0
    %235 = vmatprep.subr.mxu0 0.0
    %236 = vmatpush1.msra.mxu0 0.0
    %237 = vmatprep.subr.mxu0 0.0
    %238 = vmatpush1.msra.mxu0 0.0
    %239 = vmatprep.subr.mxu0 0.0
    %240 = vmatpush1.msra.mxu0 0.0
    %241 = vmatprep.subr.mxu0 0.0
    %242 = vmatpush1.msra.mxu0 0.0
    %243 = vmatprep.subr.mxu0 0.0
    %244 = vmatpush1.msra.mxu0 0.0
    %245 = vmatprep.subr.mxu0 0.0
    %246 = vmatpush1.msra.mxu0 0.0
    %247 = vmatprep.subr.mxu0 0.0
    %248 = vmatpush1.msra.mxu0 0.0
    %249 = vmatprep.subr.mxu0 0.0
    %250 = vmatpush1.msra.mxu0 0.0
    %251 = vmatprep.subr.mxu0 0.0
    %252 = vmatpush1.msra.mxu0 0.0
    %253 = vmatprep.subr.mxu0 0.0
    %254 = vmatpush1.msra.mxu0 0.0
    %255 = vmatprep.subr.mxu0 0.0
    %256 = vmatpush1.msra.mxu0 0.0
    %257 = vmatprep.subr.mxu0 0.0
    %258 = vmatpush1.msra.mxu0 0.0
    %259 = vmatprep.subr.mxu0 0.0
    %260 = vmatpush1.msra.mxu0 0.0
    %261 = vmatprep.subr.mxu0 0.0
    %262 = vmatpush1.msra.mxu0 0.0
    %263 = vmatprep.subr.mxu0 0.0
    %264 = vmatpush1.msra.mxu0 0.0
    %265 = vmatprep.subr.mxu0 0.0
    %266 = vmatpush1.msra.mxu0 0.0
    %267 = vmatprep.subr.mxu0 0.0
    %268 = vmatpush1.msra.mxu0 0.0
    %269 = vmatprep.subr.mxu0 0.0
    %270 = vmatpush1.msra.mxu0 0.0
    %271 = vmatprep.subr.mxu0 0.0
    %272 = vmatpush1.msra.mxu0 0.0
    %273 = vmatprep.subr.mxu0 0.0
    %274 = vmatpush1.msra.mxu0 0.0
    %275 = vmatprep.subr.mxu0 0.0
    %276 = vmatpush1.msra.mxu0 0.0
    %277 = vmatprep.subr.mxu0 0.0
    %278 = vmatpush1.msra.mxu0 0.0
    %279 = vmatprep.subr.mxu0 0.0
    %280 = vmatpush1.msra.mxu0 0.0
    %281 = vmatprep.subr.mxu0 0.0
    %282 = vmatpush1.msra.mxu0 0.0
    %283 = vmatprep.subr.mxu0 0.0
    %284 = vmatpush1.msra.mxu0 0.0
    %285 = vmatprep.subr.mxu0 0.0
    %286 = vmatpush1.msra.mxu0 0.0
    %287 = vmatprep.mubr.f32.mxu0 0.0
    %288 = vmatmul.mubr.f32.gmra.mrb[0].mxu0 %v221
    %v289 = vpop.f32.mrb[0].mxu0
    %v290 = vadd.f32 0.0, %v289
    %v291 = vpop.f32.mrb[0].mxu0
    %292 = vdwg.mxu0
    %293 = vrot.lane.b32.xlu0 %v112, 112
    %v294 = vpop.permute.xlu0 %293
    %295 = vrot.lane.b32.xlu0 %v112, 80
    %v296 = vpop.permute.xlu0 %295
    %v297 = vsel %vm124, %v294, 0
    %v299 = vsel %vm124, %v296, 0
    %301 = vmatprep.subr.mxu0 0.0
    %302 = vmatpush1.xpose.msra.mxu0 %v299
    %303 = vmatprep.subr.mxu0 0.0
    %304 = vmatpush1.xpose.msra.mxu0 0.0
    %305 = vmatprep.subr.mxu0 0.0
    %306 = vmatpush1.xpose.msra.mxu0 0.0
    %307 = vmatprep.subr.mxu0 0.0
    %308 = vmatpush1.xpose.msra.mxu0 0.0
    %309 = vmatprep.subr.mxu0 0.0
    %310 = vmatpush1.xpose.msra.mxu0 0.0
    %311 = vmatprep.subr.mxu0 0.0
    %312 = vmatpush1.xpose.msra.mxu0 0.0
    %313 = vmatprep.subr.mxu0 0.0
    %314 = vmatpush1.xpose.msra.mxu0 0.0
    %315 = vmatprep.subr.mxu0 0.0
    %316 = vmatpush1.xpose.msra.mxu0 0.0
    %317 = vmatprep.subr.mxu0 0.0
    %318 = vmatpush1.xpose.msra.mxu0 0.0
    %319 = vmatprep.subr.mxu0 0.0
    %320 = vmatpush1.xpose.msra.mxu0 0.0
    %321 = vmatprep.subr.mxu0 0.0
    %322 = vmatpush1.xpose.msra.mxu0 0.0
    %323 = vmatprep.subr.mxu0 0.0
    %324 = vmatpush1.xpose.msra.mxu0 0.0
    %325 = vmatprep.subr.mxu0 0.0
    %326 = vmatpush1.xpose.msra.mxu0 0.0
    %327 = vmatprep.subr.mxu0 0.0
    %328 = vmatpush1.xpose.msra.mxu0 0.0
    %329 = vmatprep.subr.mxu0 0.0
    %330 = vmatpush1.xpose.msra.mxu0 0.0
    %331 = vmatprep.subr.mxu0 0.0
    %332 = vmatpush1.xpose.msra.mxu0 0.0
    %333 = vmatprep.subr.mxu0 0.0
    %334 = vmatpush1.xpose.msra.mxu0 0.0
    %335 = vmatprep.subr.mxu0 0.0
    %336 = vmatpush1.xpose.msra.mxu0 0.0
    %337 = vmatprep.subr.mxu0 0.0
    %338 = vmatpush1.xpose.msra.mxu0 0.0
    %339 = vmatprep.subr.mxu0 0.0
    %340 = vmatpush1.xpose.msra.mxu0 0.0
    %341 = vmatprep.subr.mxu0 0.0
    %342 = vmatpush1.xpose.msra.mxu0 0.0
    %343 = vmatprep.subr.mxu0 0.0
    %344 = vmatpush1.xpose.msra.mxu0 0.0
    %345 = vmatprep.subr.mxu0 0.0
    %346 = vmatpush1.xpose.msra.mxu0 0.0
    %347 = vmatprep.subr.mxu0 0.0
    %348 = vmatpush1.xpose.msra.mxu0 0.0
    %349 = vmatprep.subr.mxu0 0.0
    %350 = vmatpush1.xpose.msra.mxu0 0.0
    %351 = vmatprep.subr.mxu0 0.0
    %352 = vmatpush1.xpose.msra.mxu0 0.0
    %353 = vmatprep.subr.mxu0 0.0
    %354 = vmatpush1.xpose.msra.mxu0 0.0
    %355 = vmatprep.subr.mxu0 0.0
    %356 = vmatpush1.xpose.msra.mxu0 0.0
    %357 = vmatprep.subr.mxu0 0.0
    %358 = vmatpush1.xpose.msra.mxu0 0.0
    %359 = vmatprep.subr.mxu0 0.0
    %360 = vmatpush1.xpose.msra.mxu0 0.0
    %361 = vmatprep.subr.mxu0 0.0
    %362 = vmatpush1.xpose.msra.mxu0 0.0
    %363 = vmatprep.subr.mxu0 0.0
    %364 = vmatpush1.xpose.msra.mxu0 0.0
    %365 = vmatprep.mubr.f32.mxu0 0.0
    %366 = vmatmul.mubr.f32.gmra.mrb[0].mxu0 %v297
    %v367 = vpop.f32.mrb[0].mxu0
    %v368 = vadd.f32 0.0, %v367
    %v369 = vpop.f32.mrb[0].mxu0
    %370 = vdwg.mxu0
    %v371 = vmul.f32 %v368, 0.25
    %v372 = vadd.f32 %v371, %v203
    %v373 = vsel %vm205, %v372, -inf
    %374 = vmax.xlane.f32.xlu0 %v373
    %v375 = vpop.xlane.xlu0 %374
    %v376 = vsub.f32 %v372, %v375
    %v377 = vmul.f32 %v376, 1.442695
    %v378 = vpow.pop %v377
    %v379 = vsel %vm205, %v378, 0.0
    %380 = vadd.xlane.f32.xlu0 %v379
    %v381 = vpop.xlane.xlu0 %380
    %v382 = vrcp.pop %v381
    %v383 = vmul.f32 %v378, %v382
    %384 = vrot.lane.b32.xlu0 %v112, 48
    %v385 = vpop.permute.xlu0 %384
    %v388 = vsel %vm205, %v383, 0
    %390 = vmatprep.subr.mxu0 0.0
    %391 = vmatpush1.msra.mxu0 %v385
    %392 = vmatprep.subr.mxu0 0.0
    %393 = vmatpush1.msra.mxu0 0.0
    %394 = vmatprep.subr.mxu0 0.0
    %395 = vmatpush1.msra.mxu0 0.0
    %396 = vmatprep.subr.mxu0 0.0
    %397 = vmatpush1.msra.mxu0 0.0
    %398 = vmatprep.subr.mxu0 0.0
    %399 = vmatpush1.msra.mxu0 0.0
    %400 = vmatprep.subr.mxu0 0.0
    %401 = vmatpush1.msra.mxu0 0.0
    %402 = vmatprep.subr.mxu0 0.0
    %403 = vmatpush1.msra.mxu0 0.0
    %404 = vmatprep.subr.mxu0 0.0
    %405 = vmatpush1.msra.mxu0 0.0
    %406 = vmatprep.subr.mxu0 0.0
    %407 = vmatpush1.msra.mxu0 0.0
    %408 = vmatprep.subr.mxu0 0.0
    %409 = vmatpush1.msra.mxu0 0.0
    %410 = vmatprep.subr.mxu0 0.0
    %411 = vmatpush1.msra.mxu0 0.0
    %412 = vmatprep.subr.mxu0 0.0
    %413 = vmatpush1.msra.mxu0 0.0
    %414 = vmatprep.subr.mxu0 0.0
    %415 = vmatpush1.msra.mxu0 0.0
    %416 = vmatprep.subr.mxu0 0.0
    %417 = vmatpush1.msra.mxu0 0.0
    %418 = vmatprep.subr.mxu0 0.0
    %419 = vmatpush1.msra.mxu0 0.0
    %420 = vmatprep.subr.mxu0 0.0
    %421 = vmatpush1.msra.mxu0 0.0
    %422 = vmatprep.subr.mxu0 0.0
    %423 = vmatpush1.msra.mxu0 0.0
    %424 = vmatprep.subr.mxu0 0.0
    %425 = vmatpush1.msra.mxu0 0.0
    %426 = vmatprep.subr.mxu0 0.0
    %427 = vmatpush1.msra.mxu0 0.0
    %428 = vmatprep.subr.mxu0 0.0
    %429 = vmatpush1.msra.mxu0 0.0
    %430 = vmatprep.subr.mxu0 0.0
    %431 = vmatpush1.msra.mxu0 0.0
    %432 = vmatprep.subr.mxu0 0.0
    %433 = vmatpush1.msra.mxu0 0.0
    %434 = vmatprep.subr.mxu0 0.0
    %435 = vmatpush1.msra.mxu0 0.0
    %436 = vmatprep.subr.mxu0 0.0
    %437 = vmatpush1.msra.mxu0 0.0
    %438 = vmatprep.subr.mxu0 0.0
    %439 = vmatpush1.msra.mxu0 0.0
    %440 = vmatprep.subr.mxu0 0.0
    %441 = vmatpush1.msra.mxu0 0.0
    %442 = vmatprep.subr.mxu0 0.0
    %443 = vmatpush1.msra.mxu0 0.0
    %444 = vmatprep.subr.mxu0 0.0
    %445 = vmatpush1.msra.mxu0 0.0
    %446 = vmatprep.subr.mxu0 0.0
    %447 = vmatpush1.msra.mxu0 0.0
    %448 = vmatprep.subr.mxu0 0.0
    %449 = vmatpush1.msra.mxu0 0.0
    %450 = vmatprep.subr.mxu0 0.0
    %451 = vmatpush1.msra.mxu0 0.0
    %452 = vmatprep.subr.mxu0 0.0
    %453 = vmatpush1.msra.mxu0 0.0
    %454 = vmatprep.mubr.f32.mxu0 0.0
    %455 = vmatmul.mubr.f32.gmra.mrb[0].mxu0 %v388
    %v456 = vpop.f32.mrb[0].mxu0
    %v457 = vadd.f32 0.0, %v456
    %v458 = vpop.f32.mrb[0].mxu0
    %459 = vdwg.mxu0
    %461 = vrot.lane.b32.xlu0 %v457, 16
    %v462 = vpop.permute.xlu0 %461
    %v464 = vsel %vm124, %v290, %v462
    %466 = vrot.lane.b32.xlu0 %v117, 96
    %v467 = vpop.permute.xlu0 %466
    %v468 = vsel %vm124, %v117, 0
    %v470 = vsel %vm124, %v467, 0
    %472 = vmatprep.subr.mxu0 0.0
    %473 = vmatpush1.xpose.msra.mxu0 %v470
    %474 = vmatprep.subr.mxu0 0.0
    %475 = vmatpush1.xpose.msra.mxu0 0.0
    %476 = vmatprep.subr.mxu0 0.0
    %477 = vmatpush1.xpose.msra.mxu0 0.0
    %478 = vmatprep.subr.mxu0 0.0
    %479 = vmatpush1.xpose.msra.mxu0 0.0
    %480 = vmatprep.subr.mxu0 0.0
    %481 = vmatpush1.xpose.msra.mxu0 0.0
    %482 = vmatprep.subr.mxu0 0.0
    %483 = vmatpush1.xpose.msra.mxu0 0.0
    %484 = vmatprep.subr.mxu0 0.0
    %485 = vmatpush1.xpose.msra.mxu0 0.0
    %486 = vmatprep.subr.mxu0 0.0
    %487 = vmatpush1.xpose.msra.mxu0 0.0
    %488 = vmatprep.subr.mxu0 0.0
    %489 = vmatpush1.xpose.msra.mxu0 0.0
    %490 = vmatprep.subr.mxu0 0.0
    %491 = vmatpush1.xpose.msra.mxu0 0.0
    %492 = vmatprep.subr.mxu0 0.0
    %493 = vmatpush1.xpose.msra.mxu0 0.0
    %494 = vmatprep.subr.mxu0 0.0
    %495 = vmatpush1.xpose.msra.mxu0 0.0
    %496 = vmatprep.subr.mxu0 0.0
    %497 = vmatpush1.xpose.msra.mxu0 0.0
    %498 = vmatprep.subr.mxu0 0.0
    %499 = vmatpush1.xpose.msra.mxu0 0.0
    %500 = vmatprep.subr.mxu0 0.0
    %501 = vmatpush1.xpose.msra.mxu0 0.0
    %502 = vmatprep.subr.mxu0 0.0
    %503 = vmatpush1.xpose.msra.mxu0 0.0
    %504 = vmatprep.subr.mxu0 0.0
    %505 = vmatpush1.xpose.msra.mxu0 0.0
    %506 = vmatprep.subr.mxu0 0.0
    %507 = vmatpush1.xpose.msra.mxu0 0.0
    %508 = vmatprep.subr.mxu0 0.0
    %509 = vmatpush1.xpose.msra.mxu0 0.0
    %510 = vmatprep.subr.mxu0 0.0
    %511 = vmatpush1.xpose.msra.mxu0 0.0
    %512 = vmatprep.subr.mxu0 0.0
    %513 = vmatpush1.xpose.msra.mxu0 0.0
    %514 = vmatprep.subr.mxu0 0.0
    %515 = vmatpush1.xpose.msra.mxu0 0.0
    %516 = vmatprep.subr.mxu0 0.0
    %517 = vmatpush1.xpose.msra.mxu0 0.0
    %518 = vmatprep.subr.mxu0 0.0
    %519 = vmatpush1.xpose.msra.mxu0 0.0
    %520 = vmatprep.subr.mxu0 0.0
    %521 = vmatpush1.xpose.msra.mxu0 0.0
    %522 = vmatprep.subr.mxu0 0.0
    %523 = vmatpush1.xpose.msra.mxu0 0.0
    %524 = vmatprep.subr.mxu0 0.0
    %525 = vmatpush1.xpose.msra.mxu0 0.0
    %526 = vmatprep.subr.mxu0 0.0
    %527 = vmatpush1.xpose.msra.mxu0 0.0
    %528 = vmatprep.subr.mxu0 0.0
    %529 = vmatpush1.xpose.msra.mxu0 0.0
    %530 = vmatprep.subr.mxu0 0.0
    %531 = vmatpush1.xpose.msra.mxu0 0.0
    %532 = vmatprep.subr.mxu0 0.0
    %533 = vmatpush1.xpose.msra.mxu0 0.0
    %534 = vmatprep.subr.mxu0 0.0
    %535 = vmatpush1.xpose.msra.mxu0 0.0
    %536 = vmatprep.mubr.f32.mxu0 0.0
    %537 = vmatmul.mubr.f32.gmra.mrb[0].mxu0 %v468
    %v538 = vpop.f32.mrb[0].mxu0
    %v539 = vadd.f32 0.0, %v538
    %v540 = vpop.f32.mrb[0].mxu0
    %541 = vdwg.mxu0
    %v542 = vmul.f32 %v539, 0.25
    %v543 = vlaneseq
    %v544 = vshrl.u32 %v543, 7
    %v545 = vsub.s32 1, %v544
    %v546 = vrot.slane %v120, %v545
    %v547 = vadd.f32 %v542, %v546
    %v548 = vsel %vm205, %v547, -inf
    %549 = vmax.xlane.f32.xlu0 %v548
    %v550 = vpop.xlane.xlu0 %549
    %v551 = vsub.f32 %v547, %v550
    %v552 = vmul.f32 %v551, 1.442695
    %v553 = vpow.pop %v552
    %v554 = vsel %vm205, %v553, 0.0
    %555 = vadd.xlane.f32.xlu0 %v554
    %v556 = vpop.xlane.xlu0 %555
    %v557 = vrcp.pop %v556
    %v558 = vmul.f32 %v553, %v557
    %559 = vrot.lane.b32.xlu0 %v117, 64
    %v560 = vpop.permute.xlu0 %559
    %v563 = vsel %vm205, %v558, 0
    %565 = vmatprep.subr.mxu0 0.0
    %566 = vmatpush1.msra.mxu0 %v560
    %567 = vmatprep.subr.mxu0 0.0
    %568 = vmatpush1.msra.mxu0 0.0
    %569 = vmatprep.subr.mxu0 0.0
    %570 = vmatpush1.msra.mxu0 0.0
    %571 = vmatprep.subr.mxu0 0.0
    %572 = vmatpush1.msra.mxu0 0.0
    %573 = vmatprep.subr.mxu0 0.0
    %574 = vmatpush1.msra.mxu0 0.0
    %575 = vmatprep.subr.mxu0 0.0
    %576 = vmatpush1.msra.mxu0 0.0
    %577 = vmatprep.subr.mxu0 0.0
    %578 = vmatpush1.msra.mxu0 0.0
    %579 = vmatprep.subr.mxu0 0.0
    %580 = vmatpush1.msra.mxu0 0.0
    %581 = vmatprep.subr.mxu0 0.0
    %582 = vmatpush1.msra.mxu0 0.0
    %583 = vmatprep.subr.mxu0 0.0
    %584 = vmatpush1.msra.mxu0 0.0
    %585 = vmatprep.subr.mxu0 0.0
    %586 = vmatpush1.msra.mxu0 0.0
    %587 = vmatprep.subr.mxu0 0.0
    %588 = vmatpush1.msra.mxu0 0.0
    %589 = vmatprep.subr.mxu0 0.0
    %590 = vmatpush1.msra.mxu0 0.0
    %591 = vmatprep.subr.mxu0 0.0
    %592 = vmatpush1.msra.mxu0 0.0
    %593 = vmatprep.subr.mxu0 0.0
    %594 = vmatpush1.msra.mxu0 0.0
    %595 = vmatprep.subr.mxu0 0.0
    %596 = vmatpush1.msra.mxu0 0.0
    %597 = vmatprep.subr.mxu0 0.0
    %598 = vmatpush1.msra.mxu0 0.0
    %599 = vmatprep.subr.mxu0 0.0
    %600 = vmatpush1.msra.mxu0 0.0
    %601 = vmatprep.subr.mxu0 0.0
    %602 = vmatpush1.msra.mxu0 0.0
    %603 = vmatprep.subr.mxu0 0.0
    %604 = vmatpush1.msra.mxu0 0.0
    %605 = vmatprep.subr.mxu0 0.0
    %606 = vmatpush1.msra.mxu0 0.0
    %607 = vmatprep.subr.mxu0 0.0
    %608 = vmatpush1.msra.mxu0 0.0
    %609 = vmatprep.subr.mxu0 0.0
    %610 = vmatpush1.msra.mxu0 0.0
    %611 = vmatprep.subr.mxu0 0.0
    %612 = vmatpush1.msra.mxu0 0.0
    %613 = vmatprep.subr.mxu0 0.0
    %614 = vmatpush1.msra.mxu0 0.0
    %615 = vmatprep.subr.mxu0 0.0
    %616 = vmatpush1.msra.mxu0 0.0
    %617 = vmatprep.subr.mxu0 0.0
    %618 = vmatpush1.msra.mxu0 0.0
    %619 = vmatprep.subr.mxu0 0.0
    %620 = vmatpush1.msra.mxu0 0.0
    %621 = vmatprep.subr.mxu0 0.0
    %622 = vmatpush1.msra.mxu0 0.0
    %623 = vmatprep.subr.mxu0 0.0
    %624 = vmatpush1.msra.mxu0 0.0
    %625 = vmatprep.subr.mxu0 0.0
    %626 = vmatpush1.msra.mxu0 0.0
    %627 = vmatprep.subr.mxu0 0.0
    %628 = vmatpush1.msra.mxu0 0.0
    %629 = vmatprep.mubr.f32.mxu0 0.0
    %630 = vmatmul.mubr.f32.gmra.mrb[0].mxu0 %v563
    %v631 = vpop.f32.mrb[0].mxu0
    %v632 = vadd.f32 0.0, %v631
    %v633 = vpop.f32.mrb[0].mxu0
    %634 = vdwg.mxu0
    %635 = vrot.lane.b32.xlu0 %v117, 112
    %v636 = vpop.permute.xlu0 %635
    %637 = vrot.lane.b32.xlu0 %v117, 80
    %v638 = vpop.permute.xlu0 %637
    %v639 = vsel %vm124, %v636, 0
    %v641 = vsel %vm124, %v638, 0
    %643 = vmatprep.subr.mxu0 0.0
    %644 = vmatpush1.xpose.msra.mxu0 %v641
    %645 = vmatprep.subr.mxu0 0.0
    %646 = vmatpush1.xpose.msra.mxu0 0.0
    %647 = vmatprep.subr.mxu0 0.0
    %648 = vmatpush1.xpose.msra.mxu0 0.0
    %649 = vmatprep.subr.mxu0 0.0
    %650 = vmatpush1.xpose.msra.mxu0 0.0
    %651 = vmatprep.subr.mxu0 0.0
    %652 = vmatpush1.xpose.msra.mxu0 0.0
    %653 = vmatprep.subr.mxu0 0.0
    %654 = vmatpush1.xpose.msra.mxu0 0.0
    %655 = vmatprep.subr.mxu0 0.0
    %656 = vmatpush1.xpose.msra.mxu0 0.0
    %657 = vmatprep.subr.mxu0 0.0
    %658 = vmatpush1.xpose.msra.mxu0 0.0
    %659 = vmatprep.subr.mxu0 0.0
    %660 = vmatpush1.xpose.msra.mxu0 0.0
    %661 = vmatprep.subr.mxu0 0.0
    %662 = vmatpush1.xpose.msra.mxu0 0.0
    %663 = vmatprep.subr.mxu0 0.0
    %664 = vmatpush1.xpose.msra.mxu0 0.0
    %665 = vmatprep.subr.mxu0 0.0
    %666 = vmatpush1.xpose.msra.mxu0 0.0
    %667 = vmatprep.subr.mxu0 0.0
    %668 = vmatpush1.xpose.msra.mxu0 0.0
    %669 = vmatprep.subr.mxu0 0.0
    %670 = vmatpush1.xpose.msra.mxu0 0.0
    %671 = vmatprep.subr.mxu0 0.0
    %672 = vmatpush1.xpose.msra.mxu0 0.0
    %673 = vmatprep.subr.mxu0 0.0
    %674 = vmatpush1.xpose.msra.mxu0 0.0
    %675 = vmatprep.subr.mxu0 0.0
    %676 = vmatpush1.xpose.msra.mxu0 0.0
    %677 = vmatprep.subr.mxu0 0.0
    %678 = vmatpush1.xpose.msra.mxu0 0.0
    %679 = vmatprep.subr.mxu0 0.0
    %680 = vmatpush1.xpose.msra.mxu0 0.0
    %681 = vmatprep.subr.mxu0 0.0
    %682 = vmatpush1.xpose.msra.mxu0 0.0
    %683 = vmatprep.subr.mxu0 0.0
    %684 = vmatpush1.xpose.msra.mxu0 0.0
    %685 = vmatprep.subr.mxu0 0.0
    %686 = vmatpush1.xpose.msra.mxu0 0.0
    %687 = vmatprep.subr.mxu0 0.0
    %688 = vmatpush1.xpose.msra.mxu0 0.0
    %689 = vmatprep.subr.mxu0 0.0
    %690 = vmatpush1.xpose.msra.mxu0 0.0
    %691 = vmatprep.subr.mxu0 0.0
    %692 = vmatpush1.xpose.msra.mxu0 0.0
    %693 = vmatprep.subr.mxu0 0.0
    %694 = vmatpush1.xpose.msra.mxu0 0.0
    %695 = vmatprep.subr.mxu0 0.0
    %696 = vmatpush1.xpose.msra.mxu0 0.0
    %697 = vmatprep.subr.mxu0 0.0
    %698 = vmatpush1.xpose.msra.mxu0 0.0
    %699 = vmatprep.subr.mxu0 0.0
    %700 = vmatpush1.xpose.msra.mxu0 0.0
    %701 = vmatprep.subr.mxu0 0.0
    %702 = vmatpush1.xpose.msra.mxu0 0.0
    %703 = vmatprep.subr.mxu0 0.0
    %704 = vmatpush1.xpose.msra.mxu0 0.0
    %705 = vmatprep.subr.mxu0 0.0
    %706 = vmatpush1.xpose.msra.mxu0 0.0
    %707 = vmatprep.mubr.f32.mxu0 0.0
    %708 = vmatmul.mubr.f32.gmra.mrb[0].mxu0 %v639
    %v709 = vpop.f32.mrb[0].mxu0
    %v710 = vadd.f32 0.0, %v709
    %v711 = vpop.f32.mrb[0].mxu0
    %712 = vdwg.mxu0
    %v713 = vmul.f32 %v710, 0.25
    %v714 = vadd.f32 %v713, %v546
    %v715 = vsel %vm205, %v714, -inf
    %716 = vmax.xlane.f32.xlu0 %v715
    %v717 = vpop.xlane.xlu0 %716
    %v718 = vsub.f32 %v714, %v717
    %v719 = vmul.f32 %v718, 1.442695
    %v720 = vpow.pop %v719
    %v721 = vsel %vm205, %v720, 0.0
    %722 = vadd.xlane.f32.xlu0 %v721
    %v723 = vpop.xlane.xlu0 %722
    %v724 = vrcp.pop %v723
    %v725 = vmul.f32 %v720, %v724
    %726 = vrot.lane.b32.xlu0 %v117, 48
    %v727 = vpop.permute.xlu0 %726
    %v730 = vsel %vm205, %v725, 0
    %732 = vmatprep.subr.mxu0 0.0
    %733 = vmatpush1.msra.mxu0 %v727
    %734 = vmatprep.subr.mxu0 0.0
    %735 = vmatpush1.msra.mxu0 0.0
    %736 = vmatprep.subr.mxu0 0.0
    %737 = vmatpush1.msra.mxu0 0.0
    %738 = vmatprep.subr.mxu0 0.0
    %739 = vmatpush1.msra.mxu0 0.0
    %740 = vmatprep.subr.mxu0 0.0
    %741 = vmatpush1.msra.mxu0 0.0
    %742 = vmatprep.subr.mxu0 0.0
    %743 = vmatpush1.msra.mxu0 0.0
    %744 = vmatprep.subr.mxu0 0.0
    %745 = vmatpush1.msra.mxu0 0.0
    %746 = vmatprep.subr.mxu0 0.0
    %747 = vmatpush1.msra.mxu0 0.0
    %748 = vmatprep.subr.mxu0 0.0
    %749 = vmatpush1.msra.mxu0 0.0
    %750 = vmatprep.subr.mxu0 0.0
    %751 = vmatpush1.msra.mxu0 0.0
    %752 = vmatprep.subr.mxu0 0.0
    %753 = vmatpush1.msra.mxu0 0.0
    %754 = vmatprep.subr.mxu0 0.0
    %755 = vmatpush1.msra.mxu0 0.0
    %756 = vmatprep.subr.mxu0 0.0
    %757 = vmatpush1.msra.mxu0 0.0
    %758 = vmatprep.subr.mxu0 0.0
    %759 = vmatpush1.msra.mxu0 0.0
    %760 = vmatprep.subr.mxu0 0.0
    %761 = vmatpush1.msra.mxu0 0.0
    %762 = vmatprep.subr.mxu0 0.0
    %763 = vmatpush1.msra.mxu0 0.0
    %764 = vmatprep.subr.mxu0 0.0
    %765 = vmatpush1.msra.mxu0 0.0
    %766 = vmatprep.subr.mxu0 0.0
    %767 = vmatpush1.msra.mxu0 0.0
    %768 = vmatprep.subr.mxu0 0.0
    %769 = vmatpush1.msra.mxu0 0.0
    %770 = vmatprep.subr.mxu0 0.0
    %771 = vmatpush1.msra.mxu0 0.0
    %772 = vmatprep.subr.mxu0 0.0
    %773 = vmatpush1.msra.mxu0 0.0
    %774 = vmatprep.subr.mxu0 0.0
    %775 = vmatpush1.msra.mxu0 0.0
    %776 = vmatprep.subr.mxu0 0.0
    %777 = vmatpush1.msra.mxu0 0.0
    %778 = vmatprep.subr.mxu0 0.0
    %779 = vmatpush1.msra.mxu0 0.0
    %780 = vmatprep.subr.mxu0 0.0
    %781 = vmatpush1.msra.mxu0 0.0
    %782 = vmatprep.subr.mxu0 0.0
    %783 = vmatpush1.msra.mxu0 0.0
    %784 = vmatprep.subr.mxu0 0.0
    %785 = vmatpush1.msra.mxu0 0.0
    %786 = vmatprep.subr.mxu0 0.0
    %787 = vmatpush1.msra.mxu0 0.0
    %788 = vmatprep.subr.mxu0 0.0
    %789 = vmatpush1.msra.mxu0 0.0
    %790 = vmatprep.subr.mxu0 0.0
    %791 = vmatpush1.msra.mxu0 0.0
    %792 = vmatprep.subr.mxu0 0.0
    %793 = vmatpush1.msra.mxu0 0.0
    %794 = vmatprep.subr.mxu0 0.0
    %795 = vmatpush1.msra.mxu0 0.0
    %796 = vmatprep.mubr.f32.mxu0 0.0
    %797 = vmatmul.mubr.f32.gmra.mrb[0].mxu0 %v730
    %v798 = vpop.f32.mrb[0].mxu0
    %v799 = vadd.f32 0.0, %v798
    %v800 = vpop.f32.mrb[0].mxu0
    %801 = vdwg.mxu0
    %803 = vrot.lane.b32.xlu0 %v799, 16
    %v804 = vpop.permute.xlu0 %803
    %v806 = vsel %vm124, %v632, %v804
    %v807 = vld [vmem:[%s3] sm:$0xff]
    %v808 = vld [vmem:[%s3 + $0x8] sm:$0xff]
    %v809 = vld [vmem:[%s3 + $0x10] sm:$0xff]
    %v810 = vld [vmem:[%s3 + $0x18] sm:$0xff]
    %v811 = vlaneseq
    %v812 = vshrl.u32 %v811, 7
    %v813 = vsub.s32 1, %v812
    %v814 = vrot.slane %v29, %v813
    %v816 = vsel %vm38, %v464, 0
    %v819 = vsel %vm38, %v806, 0
    %821 = vmatprep.subr.mxu0 0.0
    %822 = vmatpush1.msra.mxu0 %v807
    %823 = vmatprep.subr.mxu0 0.0
    %824 = vmatpush1.msra.mxu0 %v808
    %825 = vmatprep.subr.mxu0 0.0
    %826 = vmatpush1.msra.mxu0 %v809
    %827 = vmatprep.subr.mxu0 0.0
    %828 = vmatpush1.msra.mxu0 %v810
    %829 = vmatprep.subr.mxu0 0.0
    %830 = vmatpush1.msra.mxu0 0.0
    %831 = vmatprep.subr.mxu0 0.0
    %832 = vmatpush1.msra.mxu0 0.0
    %833 = vmatprep.subr.mxu0 0.0
    %834 = vmatpush1.msra.mxu0 0.0
    %835 = vmatprep.subr.mxu0 0.0
    %836 = vmatpush1.msra.mxu0 0.0
    %837 = vmatprep.subr.mxu0 0.0
    %838 = vmatpush1.msra.mxu0 0.0
    %839 = vmatprep.subr.mxu0 0.0
    %840 = vmatpush1.msra.mxu0 0.0
    %841 = vmatprep.subr.mxu0 0.0
    %842 = vmatpush1.msra.mxu0 0.0
    %843 = vmatprep.subr.mxu0 0.0
    %844 = vmatpush1.msra.mxu0 0.0
    %845 = vmatprep.subr.mxu0 0.0
    %846 = vmatpush1.msra.mxu0 0.0
    %847 = vmatprep.subr.mxu0 0.0
    %848 = vmatpush1.msra.mxu0 0.0
    %849 = vmatprep.subr.mxu0 0.0
    %850 = vmatpush1.msra.mxu0 0.0
    %851 = vmatprep.subr.mxu0 0.0
    %852 = vmatpush1.msra.mxu0 0.0
    %853 = vmatprep.subr.mxu0 0.0
    %854 = vmatpush1.msra.mxu0 0.0
    %855 = vmatprep.subr.mxu0 0.0
    %856 = vmatpush1.msra.mxu0 0.0
    %857 = vmatprep.subr.mxu0 0.0
    %858 = vmatpush1.msra.mxu0 0.0
    %859 = vmatprep.subr.mxu0 0.0
    %860 = vmatpush1.msra.mxu0 0.0
    %861 = vmatprep.subr.mxu0 0.0
    %862 = vmatpush1.msra.mxu0 0.0
    %863 = vmatprep.subr.mxu0 0.0
    %864 = vmatpush1.msra.mxu0 0.0
    %865 = vmatprep.subr.mxu0 0.0
    %866 = vmatpush1.msra.mxu0 0.0
    %867 = vmatprep.subr.mxu0 0.0
    %868 = vmatpush1.msra.mxu0 0.0
    %869 = vmatprep.subr.mxu0 0.0
    %870 = vmatpush1.msra.mxu0 0.0
    %871 = vmatprep.subr.mxu0 0.0
    %872 = vmatpush1.msra.mxu0 0.0
    %873 = vmatprep.subr.mxu0 0.0
    %874 = vmatpush1.msra.mxu0 0.0
    %875 = vmatprep.subr.mxu0 0.0
    %876 = vmatpush1.msra.mxu0 0.0
    %877 = vmatprep.subr.mxu0 0.0
    %878 = vmatpush1.msra.mxu0 0.0
    %879 = vmatprep.subr.mxu0 0.0
    %880 = vmatpush1.msra.mxu0 0.0
    %881 = vmatprep.subr.mxu0 0.0
    %882 = vmatpush1.msra.mxu0 0.0
    %883 = vmatprep.subr.mxu0 0.0
    %884 = vmatpush1.msra.mxu0 0.0
    %885 = vmatprep.mubr.f32.mxu0 0.0
    %886 = vmatmul.mubr.f32.gmra.mrb[0].mxu0 %v816
    %v887 = vpop.f32.mrb[0].mxu0
    %v888 = vadd.f32 %v814, %v887
    %v889 = vpop.f32.mrb[0].mxu0
    %890 = vmatprep.mubr.f32.mxu0 0.0
    %891 = vmatmul.mubr.f32.gmra.mrb[0].mxu0 %v819
    %v892 = vpop.f32.mrb[0].mxu0
    %v893 = vadd.f32 %v814, %v892
    %v894 = vpop.f32.mrb[0].mxu0
    %895 = vdwg.mxu0
    %v896 = vadd.f32 %v27, %v888
    %v897 = vadd.f32 %v28, %v893
    %v898 = vsel %vm38, %v896, 0.0
    %899 = vadd.xlane.f32.xlu0 %v898
    %v900 = vpop.xlane.xlu0 %899
    %v901 = vsel %vm38, %v897, 0.0
    %902 = vadd.xlane.f32.xlu0 %v901
    %v903 = vpop.xlane.xlu0 %902
    %v904 = vrcp.pop 32.0
    %v905 = vmul.f32 %v900, %v904
    %v906 = vmul.f32 %v903, %v904
    %v907 = vsub.f32 %v896, %v905
    %v908 = vsub.f32 %v897, %v906
    %v909 = vmul.f32 %v907, %v907
    %v910 = vmul.f32 %v908, %v908
    %v911 = vsel %vm38, %v909, 0.0
    %912 = vadd.xlane.f32.xlu0 %v911
    %v913 = vpop.xlane.xlu0 %912
    %v914 = vsel %vm38, %v910, 0.0
    %915 = vadd.xlane.f32.xlu0 %v914
    %v916 = vpop.xlane.xlu0 %915
    %v917 = vmul.f32 %v913, %v904
    %v918 = vmul.f32 %v916, %v904
    %v919 = vadd.f32 %v917, 1e-12
    %v920 = vadd.f32 %v918, 1e-12
    %v921 = vrsqrt.pop %v919
    %v922 = vrsqrt.pop %v920
    %v923 = vmul.f32 %v907, %v921
    %v924 = vmul.f32 %v908, %v922
    %v925 = vlaneseq
    %v926 = vshrl.u32 %v925, 7
    %v927 = vsub.s32 4, %v926
    %v928 = vrot.slane %v29, %v927
    %v929 = vmul.f32 %v923, %v928
    %v930 = vmul.f32 %v924, %v928
    %v931 = vlaneseq
    %v932 = vshrl.u32 %v931, 7
    %v933 = vsub.s32 5, %v932
    %v934 = vrot.slane %v29, %v933
    %v935 = vadd.f32 %v929, %v934
    %v936 = vadd.f32 %v930, %v934
    %v937 = vld [vmem:[%s4] sm:$0xff]
    %v938 = vld [vmem:[%s4 + $0x8] sm:$0xff]
    %v939 = vld [vmem:[%s4 + $0x10] sm:$0xff]
    %v940 = vld [vmem:[%s4 + $0x18] sm:$0xff]
    %v941 = vlaneseq
    %v942 = vshrl.u32 %v941, 7
    %v943 = vsub.s32 2, %v942
    %v944 = vrot.slane %v29, %v943
    %v946 = vsel %vm38, %v935, 0
    %v949 = vsel %vm38, %v936, 0
    %951 = vmatprep.subr.mxu0 0.0
    %952 = vmatpush1.msra.mxu0 %v937
    %953 = vmatprep.subr.mxu0 0.0
    %954 = vmatpush1.msra.mxu0 %v938
    %955 = vmatprep.subr.mxu0 0.0
    %956 = vmatpush1.msra.mxu0 %v939
    %957 = vmatprep.subr.mxu0 0.0
    %958 = vmatpush1.msra.mxu0 %v940
    %959 = vmatprep.subr.mxu0 0.0
    %960 = vmatpush1.msra.mxu0 0.0
    %961 = vmatprep.subr.mxu0 0.0
    %962 = vmatpush1.msra.mxu0 0.0
    %963 = vmatprep.subr.mxu0 0.0
    %964 = vmatpush1.msra.mxu0 0.0
    %965 = vmatprep.subr.mxu0 0.0
    %966 = vmatpush1.msra.mxu0 0.0
    %967 = vmatprep.subr.mxu0 0.0
    %968 = vmatpush1.msra.mxu0 0.0
    %969 = vmatprep.subr.mxu0 0.0
    %970 = vmatpush1.msra.mxu0 0.0
    %971 = vmatprep.subr.mxu0 0.0
    %972 = vmatpush1.msra.mxu0 0.0
    %973 = vmatprep.subr.mxu0 0.0
    %974 = vmatpush1.msra.mxu0 0.0
    %975 = vmatprep.subr.mxu0 0.0
    %976 = vmatpush1.msra.mxu0 0.0
    %977 = vmatprep.subr.mxu0 0.0
    %978 = vmatpush1.msra.mxu0 0.0
    %979 = vmatprep.subr.mxu0 0.0
    %980 = vmatpush1.msra.mxu0 0.0
    %981 = vmatprep.subr.mxu0 0.0
    %982 = vmatpush1.msra.mxu0 0.0
    %983 = vmatprep.subr.mxu0 0.0
    %984 = vmatpush1.msra.mxu0 0.0
    %985 = vmatprep.subr.mxu0 0.0
    %986 = vmatpush1.msra.mxu0 0.0
    %987 = vmatprep.subr.mxu0 0.0
    %988 = vmatpush1.msra.mxu0 0.0
    %989 = vmatprep.subr.mxu0 0.0
    %990 = vmatpush1.msra.mxu0 0.0
    %991 = vmatprep.subr.mxu0 0.0
    %992 = vmatpush1.msra.mxu0 0.0
    %993 = vmatprep.subr.mxu0 0.0
    %994 = vmatpush1.msra.mxu0 0.0
    %995 = vmatprep.subr.mxu0 0.0
    %996 = vmatpush1.msra.mxu0 0.0
    %997 = vmatprep.subr.mxu0 0.0
    %998 = vmatpush1.msra.mxu0 0.0
    %999 = vmatprep.subr.mxu0 0.0
    %1000 = vmatpush1.msra.mxu0 0.0
    %1001 = vmatprep.subr.mxu0 0.0
    %1002 = vmatpush1.msra.mxu0 0.0
    %1003 = vmatprep.subr.mxu0 0.0
    %1004 = vmatpush1.msra.mxu0 0.0
    %1005 = vmatprep.subr.mxu0 0.0
    %1006 = vmatpush1.msra.mxu0 0.0
    %1007 = vmatprep.subr.mxu0 0.0
    %1008 = vmatpush1.msra.mxu0 0.0
    %1009 = vmatprep.subr.mxu0 0.0
    %1010 = vmatpush1.msra.mxu0 0.0
    %1011 = vmatprep.subr.mxu0 0.0
    %1012 = vmatpush1.msra.mxu0 0.0
    %1013 = vmatprep.subr.mxu0 0.0
    %1014 = vmatpush1.msra.mxu0 0.0
    %1015 = vmatprep.mubr.f32.mxu0 0.0
    %1016 = vmatmul.mubr.f32.gmra.mrb[0].mxu0 %v946
    %v1017 = vpop.f32.mrb[0].mxu0
    %v1018 = vadd.f32 %v944, %v1017
    %v1019 = vpop.f32.mrb[0].mxu0
    %1020 = vmatprep.mubr.f32.mxu0 0.0
    %1021 = vmatmul.mubr.f32.gmra.mrb[0].mxu0 %v949
    %v1022 = vpop.f32.mrb[0].mxu0
    %v1023 = vadd.f32 %v944, %v1022
    %v1024 = vpop.f32.mrb[0].mxu0
    %1025 = vdwg.mxu0
    %v1026 = vmul.f32 %v1018, 0.5
    %v1027 = vmul.f32 %v1023, 0.5
    %v1028 = vmul.f32 %v1018, 0.044715
    %v1029 = vmul.f32 %v1023, 0.044715
    %v1030 = vmul.f32 %v1028, %v1018
    %v1031 = vmul.f32 %v1029, %v1023
    %v1032 = vmul.f32 %v1030, %v1018
    %v1033 = vmul.f32 %v1031, %v1023
    %v1034 = vadd.f32 %v1018, %v1032
    %v1035 = vadd.f32 %v1023, %v1033
    %v1036 = vmul.f32 %v1034, 0.7978846
    %v1037 = vmul.f32 %v1035, 0.7978846
    %v1038 = vtanh.pop %v1036
    %v1039 = vtanh.pop %v1037
    %v1040 = vadd.f32 %v1038, 1.0
    %v1041 = vadd.f32 %v1039, 1.0
    %v1042 = vmul.f32 %v1026, %v1040
    %v1043 = vmul.f32 %v1027, %v1041
    %v1044 = vld [vmem:[%s5] sm:$0xff]
    %v1045 = vld [vmem:[%s5 + $0x8] sm:$0xff]
    %v1046 = vld [vmem:[%s5 + $0x10] sm:$0xff]
    %v1047 = vld [vmem:[%s5 + $0x18] sm:$0xff]
    %v1048 = vld [vmem:[%s5 + $0x20] sm:$0xff]
    %v1049 = vld [vmem:[%s5 + $0x28] sm:$0xff]
    %v1050 = vld [vmem:[%s5 + $0x30] sm:$0xff]
    %v1051 = vld [vmem:[%s5 + $0x38] sm:$0xff]
    %v1052 = vlaneseq
    %v1053 = vshrl.u32 %v1052, 7
    %v1054 = vsub.s32 3, %v1053
    %v1055 = vrot.slane %v29, %v1054
    %vm1056 = vcmask 523264
    %v1058 = vsel %vm1056, %v1042, 0
    %v1061 = vsel %vm1056, %v1043, 0
    %1063 = vmatprep.subr.mxu0 0.0
    %1064 = vmatpush1.msra.mxu0 %v1044
    %1065 = vmatprep.subr.mxu0 0.0
    %1066 = vmatpush1.msra.mxu0 %v1045
    %1067 = vmatprep.subr.mxu0 0.0
    %1068 = vmatpush1.msra.mxu0 %v1046
    %1069 = vmatprep.subr.mxu0 0.0
    %1070 = vmatpush1.msra.mxu0 %v1047
    %1071 = vmatprep.subr.mxu0 0.0
    %1072 = vmatpush1.msra.mxu0 %v1048
    %1073 = vmatprep.subr.mxu0 0.0
    %1074 = vmatpush1.msra.mxu0 %v1049
    %1075 = vmatprep.subr.mxu0 0.0
    %1076 = vmatpush1.msra.mxu0 %v1050
    %1077 = vmatprep.subr.mxu0 0.0
    %1078 = vmatpush1.msra.mxu0 %v1051
    %1079 = vmatprep.subr.mxu0 0.0
    %1080 = vmatpush1.msra.mxu0 0.0
    %1081 = vmatprep.subr.mxu0 0.0
    %1082 = vmatpush1.msra.mxu0 0.0
    %1083 = vmatprep.subr.mxu0 0.0
    %1084 = vmatpush1.msra.mxu0 0.0
    %1085 = vmatprep.subr.mxu0 0.0
    %1086 = vmatpush1.msra.mxu0 0.0
    %1087 = vmatprep.subr.mxu0 0.0
    %1088 = vmatpush1.msra.mxu0 0.0
    %1089 = vmatprep.subr.mxu0 0.0
    %1090 = vmatpush1.msra.mxu0 0.0
    %1091 = vmatprep.subr.mxu0 0.0
    %1092 = vmatpush1.msra.mxu0 0.0
    %1093 = vmatprep.subr.mxu0 0.0
    %1094 = vmatpush1.msra.mxu0 0.0
    %1095 = vmatprep.subr.mxu0 0.0
    %1096 = vmatpush1.msra.mxu0 0.0
    %1097 = vmatprep.subr.mxu0 0.0
    %1098 = vmatpush1.msra.mxu0 0.0
    %1099 = vmatprep.subr.mxu0 0.0
    %1100 = vmatpush1.msra.mxu0 0.0
    %1101 = vmatprep.subr.mxu0 0.0
    %1102 = vmatpush1.msra.mxu0 0.0
    %1103 = vmatprep.subr.mxu0 0.0
    %1104 = vmatpush1.msra.mxu0 0.0
    %1105 = vmatprep.subr.mxu0 0.0
    %1106 = vmatpush1.msra.mxu0 0.0
    %1107 = vmatprep.subr.mxu0 0.0
    %1108 = vmatpush1.msra.mxu0 0.0
    %1109 = vmatprep.subr.mxu0 0.0
    %1110 = vmatpush1.msra.mxu0 0.0
    %1111 = vmatprep.subr.mxu0 0.0
    %1112 = vmatpush1.msra.mxu0 0.0
    %1113 = vmatprep.subr.mxu0 0.0
    %1114 = vmatpush1.msra.mxu0 0.0
    %1115 = vmatprep.subr.mxu0 0.0
    %1116 = vmatpush1.msra.mxu0 0.0
    %1117 = vmatprep.subr.mxu0 0.0
    %1118 = vmatpush1.msra.mxu0 0.0
    %1119 = vmatprep.subr.mxu0 0.0
    %1120 = vmatpush1.msra.mxu0 0.0
    %1121 = vmatprep.subr.mxu0 0.0
    %1122 = vmatpush1.msra.mxu0 0.0
    %1123 = vmatprep.subr.mxu0 0.0
    %1124 = vmatpush1.msra.mxu0 0.0
    %1125 = vmatprep.subr.mxu0 0.0
    %1126 = vmatpush1.msra.mxu0 0.0
    %1127 = vmatprep.mubr.f32.mxu0 0.0
    %1128 = vmatmul.mubr.f32.gmra.mrb[0].mxu0 %v1058
    %v1129 = vpop.f32.mrb[0].mxu0
    %v1130 = vadd.f32 %v1055, %v1129
    %v1131 = vpop.f32.mrb[0].mxu0
    %1132 = vmatprep.mubr.f32.mxu0 0.0
    %1133 = vmatmul.mubr.f32.gmra.mrb[0].mxu0 %v1061
    %v1134 = vpop.f32.mrb[0].mxu0
    %v1135 = vadd.f32 %v1055, %v1134
    %v1136 = vpop.f32.mrb[0].mxu0
    %1137 = vdwg.mxu0
    %v1138 = vadd.f32 %v935, %v1130
    %v1139 = vadd.f32 %v936, %v1135
    %v1140 = vsel %vm38, %v1138, 0.0
    %1141 = vadd.xlane.f32.xlu0 %v1140
    %v1142 = vpop.xlane.xlu0 %1141
    %v1143 = vsel %vm38, %v1139, 0.0
    %1144 = vadd.xlane.f32.xlu0 %v1143
    %v1145 = vpop.xlane.xlu0 %1144
    %v1146 = vmul.f32 %v1142, %v904
    %v1147 = vmul.f32 %v1145, %v904
    %v1148 = vsub.f32 %v1138, %v1146
    %v1149 = vsub.f32 %v1139, %v1147
    %v1150 = vmul.f32 %v1148, %v1148
    %v1151 = vmul.f32 %v1149, %v1149
    %v1152 = vsel %vm38, %v1150, 0.0
    %1153 = vadd.xlane.f32.xlu0 %v1152
    %v1154 = vpop.xlane.xlu0 %1153
    %v1155 = vsel %vm38, %v1151, 0.0
    %1156 = vadd.xlane.f32.xlu0 %v1155
    %v1157 = vpop.xlane.xlu0 %1156
    %v1158 = vmul.f32 %v1154, %v904
    %v1159 = vmul.f32 %v1157, %v904
    %v1160 = vadd.f32 %v1158, 1e-12
    %v1161 = vadd.f32 %v1159, 1e-12
    %v1162 = vrsqrt.pop %v1160
    %v1163 = vrsqrt.pop %v1161
    %v1164 = vmul.f32 %v1148, %v1162
    %v1165 = vmul.f32 %v1149, %v1163
    %v1166 = vlaneseq
    %v1167 = vshrl.u32 %v1166, 7
    %v1168 = vsub.s32 6, %v1167
    %v1169 = vrot.slane %v29, %v1168
    %v1170 = vmul.f32 %v1164, %v1169
    %v1171 = vmul.f32 %v1165, %v1169
    %v1172 = vlaneseq
    %v1173 = vshrl.u32 %v1172, 7
    %v1174 = vsub.s32 7, %v1173
    %v1175 = vrot.slane %v29, %v1174
    %v1176 = vadd.f32 %v1170, %v1175
    %v1177 = vadd.f32 %v1171, %v1175
    %1178 = vst.msk [vmem:[#allocation2] sm:$0xff] %vm38, %v1176
    %1179 = vst.msk [vmem:[#allocation2 + $0x8] sm:$0xff] %vm38, %v1177
    // Predicated region
    $region30: #{transformers_wrapper_forward.1} parent=1 // pred_check
      _
    $region31: #{transformers_wrapper_forward.1} parent=1 // pred_check_branch
      %1181 = sbr.rel (0) target = $region33
    $region32: #{transformers_wrapper_forward.1} parent=1 // pred_region
      %s1183 = ssub.s32 256, 256
      %1184 = vsyncadd [#allocation3], %s1183
      %s1185 = sshll.u32 [#allocation2], 4
      %s1186 = int_to_ptr.vmem [resolvable:$true] %s1185
      %1191 = dma.vmem_to_hbm [thread:$0]  %s1186, 256, %s7, [#allocation3], 128, 128, 8
    $region33: #{transformers_wrapper_forward.1} parent=1 // pred_fallthru
      _
    // Predicated region
    $region34: #{transformers_wrapper_forward.1} parent=1 // pred_check
      _
    $region35: #{transformers_wrapper_forward.1} parent=1 // pred_check_branch
      %1193 = sbr.rel (0) target = $region37
    $region36: #{transformers_wrapper_forward.1} parent=1 // pred_region
      %1194 = dma.done [#allocation3], 256
    $region37: #{transformers_wrapper_forward.1} parent=1 // pred_fallthru
      _
    %1195 = vsyncpa [#allocation3], 1

</llo_original>
